<compile_context>
chip_gen: v5e
topology: v5e:2x2
jax: 0.10.0
libtpu: 0.0.40
codegen_flags: <defaults>
</compile_context>

<pallas_src>
import functools

import jax
import jax.numpy as jnp
from jax.experimental import pallas as pl
from jax.experimental.pallas import tpu as pltpu

LANE = 128


def _round_up(x, m):
    return (x + m - 1) // m * m


# ----------------------------- Pallas kernels -----------------------------

def _conv_relu_pool_kernel(x_ref, w_ref, b_ref, o_ref):
    """Fused conv (matmul over im2col patches) + bias + ReLU + 2x2 maxpool.

    x_ref: (4, M, Kp) bf16  corner-major patches for one image, M = Hp*Wp
    w_ref: (Kp, 128) bf16   conv weight, Cout zero-padded to 128 lanes
    b_ref: (1, 128)  f32    bias, zero-padded
    o_ref: (M, 128)  bf16   pooled activation, channels in lanes
    """
    w = w_ref[...]
    y = jnp.dot(x_ref[0], w, preferred_element_type=jnp.float32)
    for c in range(1, 4):
        y = jnp.maximum(y, jnp.dot(x_ref[c], w, preferred_element_type=jnp.float32))
    # max over the 2x2 window commutes with the (monotone) bias-add + ReLU epilogue.
    y = jnp.maximum(y + b_ref[...], 0.0)
    o_ref[...] = y.astype(o_ref.dtype)


def _fc_stack_softmax_kernel(x_ref, w1_ref, b1_ref, w2_ref, b2_ref,
                             w3_ref, b3_ref, o_ref, *, valid_n):
    """fc1+ReLU -> fc2+ReLU -> fc3 -> masked softmax, fully VMEM-resident (no grid)."""
    h = jnp.dot(x_ref[...], w1_ref[...], preferred_element_type=jnp.float32)
    h = jnp.maximum(h + b1_ref[...], 0.0).astype(jnp.bfloat16)
    h = jnp.dot(h, w2_ref[...], preferred_element_type=jnp.float32)
    h = jnp.maximum(h + b2_ref[...], 0.0).astype(jnp.bfloat16)
    logits = jnp.dot(h, w3_ref[...], preferred_element_type=jnp.float32) + b3_ref[...]

    # Row-wise softmax over the first `valid_n` lanes of the 128-padded logits.
    col = jax.lax.broadcasted_iota(jnp.int32, logits.shape, dimension=1)
    mask = col < valid_n
    xm = jnp.where(mask, logits, -jnp.inf)
    m = jnp.max(xm, axis=-1, keepdims=True)
    e = jnp.exp(xm - m)                       # exp(-inf) = 0 on padded lanes
    s = jnp.sum(e, axis=-1, keepdims=True)
    o_ref[...] = (e / s).astype(o_ref.dtype)


# ----------------------------- kernel wrappers -----------------------------

def conv_relu_pool(patches, w_pad, b_pad):
    """patches: (B, 4, M, Kp) bf16 -> (B, M, 128) bf16 pooled activations."""
    B, four, m, kp = patches.shape
    assert four == 4 and kp % LANE == 0
    return pl.pallas_call(
        _conv_relu_pool_kernel,
        out_shape=jax.ShapeDtypeStruct((B, m, LANE), jnp.bfloat16),
        grid_spec=pltpu.PrefetchScalarGridSpec(
            num_scalar_prefetch=0,
            grid=(B,),
            in_specs=[
                pl.BlockSpec((None, 4, m, kp), lambda b: (b, 0, 0, 0)),
                pl.BlockSpec((kp, LANE), lambda b: (0, 0)),
                pl.BlockSpec((1, LANE), lambda b: (0, 0)),
            ],
            out_specs=pl.BlockSpec((None, m, LANE), lambda b: (b, 0, 0)),
        ),
        compiler_params=pltpu.CompilerParams(
            dimension_semantics=("parallel",),   # one image per TensorCore on v7x
        ),
    )(patches, w_pad, b_pad)


def fc_stack_softmax(feats, w1, b1, w2, b2, w3, b3, num_classes):
    """feats: (B, 512) bf16 -> (B, 128) f32 padded class probabilities."""
    B = feats.shape[0]
    vmem = pl.BlockSpec(memory_space=pltpu.MemorySpace.VMEM)
    return pl.pallas_call(
        functools.partial(_fc_stack_softmax_kernel, valid_n=num_classes),
        out_shape=jax.ShapeDtypeStruct((B, LANE), jnp.float32),
        in_specs=[vmem] * 7,
        out_specs=vmem,
    )(feats, w1, b1, w2, b2, w3, b3)


# ----------------------------- wrapper glue (tiny, bf16) -----------------------------

def _im2col_pool_patches(x, kh, kw):
    """NHWC (B,H,W,C) -> (B, 4, Hp*Wp, kh*kw*C) patches, corner-major for 2x2 pooling.

    Patch columns are ordered (ky, kx, ci) to match HWIO weights reshaped to (kh*kw*C, Cout).
    Corner c = dy*2+dx holds the patch for conv-output position (2*hp+dy, 2*wp+dx).
    """
    B, H, W, C = x.shape
    Ho, Wo = H - kh + 1, W - kw + 1
    assert Ho % 2 == 0 and Wo % 2 == 0, "2x2 pool fusion assumes even conv output dims"
    Hp, Wp = Ho // 2, Wo // 2
    cols = [x[:, ky:ky + Ho, kx:kx + Wo, :] for ky in range(kh) for kx in range(kw)]
    p = jnp.stack(cols, axis=3)                        # (B, Ho, Wo, kh*kw, C)
    p = p.reshape(B, Hp, 2, Wp, 2, kh * kw * C)        # split into pool windows
    p = p.transpose(0, 2, 4, 1, 3, 5)                  # (B, dy, dx, Hp, Wp, K)
    return p.reshape(B, 4, Hp * Wp, kh * kw * C), (Hp, Wp)


def _pad_last(p, k_pad):
    k = p.shape[-1]
    return jnp.pad(p, ((0, 0),) * (p.ndim - 1) + ((0, k_pad - k),))


# ----------------------------- parameters -----------------------------

def init_params(key, num_classes):
    """Raw f32 parameters, torch-equivalent semantics (conv HWIO; fc1 rows in torch's
    (C,H,W) flatten order)."""
    ks = jax.random.split(key, 10)

    def conv_init(kw_, kb_, kh, kw, cin, cout):
        fan_in = kh * kw * cin
        w = jax.random.normal(kw_, (kh, kw, cin, cout), jnp.float32) * (2.0 / fan_in) ** 0.5
        b = jax.random.normal(kb_, (cout,), jnp.float32) * 0.01
        return w, b

    def fc_init(kw_, kb_, fin, fout):
        w = jax.random.normal(kw_, (fin, fout), jnp.float32) * (2.0 / fin) ** 0.5
        b = jax.random.normal(kb_, (fout,), jnp.float32) * 0.01
        return w, b

    return {
        "conv1": conv_init(ks[0], ks[1], 5, 5, 3, 6),
        "conv2": conv_init(ks[2], ks[3], 5, 5, 6, 16),
        "fc1": fc_init(ks[4], ks[5], 16 * 5 * 5, 120),
        "fc2": fc_init(ks[6], ks[7], 120, 84),
        "fc3": fc_init(ks[8], ks[9], 84, num_classes),
    }


def _pad2(w, rows, cols):
    r, c = w.shape
    return jnp.pad(w.astype(jnp.bfloat16), ((0, rows - r), (0, cols - c)))


def _pad_bias(b):
    return jnp.pad(b.astype(jnp.float32), (0, LANE - b.shape[0])).reshape(1, LANE)


def prepare_params(params, num_classes):
    """One-time (outside jit) cast to bf16 + pad to 128-lane-aligned kernel layouts."""
    assert num_classes <= LANE
    (w1c, b1c), (w2c, b2c) = params["conv1"], params["conv2"]
    (wf1, bf1), (wf2, bf2), (wf3, bf3) = params["fc1"], params["fc2"], params["fc3"]

    # Conv weights: HWIO -> (kh*kw*Cin, Cout), K padded to 128-multiple, Cout to 128.
    c1 = _pad2(w1c.reshape(-1, w1c.shape[-1]), _round_up(5 * 5 * 3, LANE), LANE)
    c2 = _pad2(w2c.reshape(-1, w2c.shape[-1]), _round_up(5 * 5 * 6, LANE), LANE)

    # fc1: torch flattens the (C=16,H=5,W=5) activation in (c,h,w) order; our conv
    # output flattens (h,w,c).  Permute fc1's rows once so the math matches exactly.
    hw = jnp.arange(25)
    cc = jnp.arange(16)
    torch_row = (cc[None, :] * 25 + hw[:, None]).reshape(-1)   # ours index -> torch index
    wf1p = wf1[torch_row, :]

    return {
        "conv1_w": c1, "conv1_b": _pad_bias(b1c),
        "conv2_w": c2, "conv2_b": _pad_bias(b2c),
        "fc1_w": _pad2(wf1p, _round_up(16 * 5 * 5, LANE), LANE), "fc1_b": _pad_bias(bf1),
        "fc2_w": _pad2(wf2, LANE, LANE), "fc2_b": _pad_bias(bf2),
        "fc3_w": _pad2(wf3, LANE, LANE), "fc3_b": _pad_bias(bf3),
    }


# ----------------------------- forward pass (mirrors the PyTorch module) -----------------------------

def cnn_forward(prepped, x_nchw, *, num_classes):
    B = x_nchw.shape[0]
    x = jnp.transpose(x_nchw, (0, 2, 3, 1)).astype(jnp.bfloat16)      # NCHW -> NHWC bf16

    # conv1 + ReLU + pool : (B,32,32,3) -> (B,14,14,6) in a 128-lane padded layout
    p1, (hp1, wp1) = _im2col_pool_patches(x, 5, 5)                    # (B,4,196,75)
    p1 = _pad_last(p1, _round_up(p1.shape[-1], LANE))                 # (B,4,196,128)
    a1 = conv_relu_pool(p1, prepped["conv1_w"], prepped["conv1_b"])   # (B,196,128) bf16

    # conv2 + ReLU + pool : -> (B,5,5,16) in a 128-lane padded layout
    a1 = a1.reshape(B, hp1, wp1, LANE)[..., :6]
    p2, (hp2, wp2) = _im2col_pool_patches(a1, 5, 5)                   # (B,4,25,150)
    p2 = _pad_last(p2, _round_up(p2.shape[-1], LANE))                 # (B,4,25,256)
    a2 = conv_relu_pool(p2, prepped["conv2_w"], prepped["conv2_b"])   # (B,25,128) bf16

    # flatten (h,w,c) -> fused fc1/fc2/fc3 + softmax (fc1 rows were permuted to match
    # torch's (c,h,w) flatten order).
    feats = a2[:, :, :16].reshape(B, 16 * hp2 * wp2)                  # (B, 400)
    feats = jnp.pad(feats, ((0, 0), (0, _round_up(400, LANE) - 400))) # (B, 512) bf16
    probs = fc_stack_softmax(feats,
                             prepped["fc1_w"], prepped["fc1_b"],
                             prepped["fc2_w"], prepped["fc2_b"],
                             prepped["fc3_w"], prepped["fc3_b"],
                             num_classes)                             # (B, 128) f32
    return probs[:, :num_classes]                                     # single final slice


if __name__ == "__main__":
    key = jax.random.PRNGKey(0)
    kp, kx = jax.random.split(key)

    num_classes = 2
    B = 2
    params = init_params(kp, num_classes)
    prepped = prepare_params(params, num_classes)      # weights padded/cast ONCE, outside jit
    x = jax.random.normal(kx, (B, 3, 32, 32), jnp.float32)   # NCHW, as in PyTorch

    fwd = jax.jit(functools.partial(cnn_forward, num_classes=num_classes))
    out = fwd(prepped, x)
    jax.block_until_ready(out)

    assert out.shape == (B, num_classes), out.shape
    assert out.dtype == jnp.float32
    assert bool(jnp.all(jnp.isfinite(out)))
    assert bool(jnp.allclose(jnp.sum(out, axis=1), 1.0, atol=1e-5))   # softmax rows sum to 1
    print("KERNEL_OK")
</pallas_src>

<mosaic_0001>
module attributes {stable_mosaic.version = 11 : i64} {
  func.func @_conv_relu_pool_kernel(%arg0: i32, %arg1: memref<1x4x196x128xbf16, #tpu.memory_space<vmem>>, %arg2: memref<128x128xbf16, #tpu.memory_space<vmem>>, %arg3: memref<1x128xf32, #tpu.memory_space<vmem>>, %arg4: memref<1x196x128xbf16, #tpu.memory_space<vmem>>) attributes {dimension_semantics = [#tpu.dimension_semantics<parallel>], iteration_bounds = array<i64: 2>, scalar_prefetch = 0 : i64, scratch_operands = 0 : i64, tpu.core_type = #tpu.core_type<tc>, window_params = [{transform_indices = @transform_0, window_bounds = array<i64: 1, 4, 196, 128>}, {pipeline_mode = #tpu.pipeline_mode<synchronous>, transform_indices = @transform_1, window_bounds = array<i64: 128, 128>}, {pipeline_mode = #tpu.pipeline_mode<synchronous>, transform_indices = @transform_2, window_bounds = array<i64: 1, 128>}, {transform_indices = @transform_3, window_bounds = array<i64: 1, 196, 128>}]} {
    %c0 = arith.constant 0 : index
    %c0_0 = arith.constant 0 : index
    %0 = vector.load %arg2[%c0, %c0_0] : memref<128x128xbf16, #tpu.memory_space<vmem>>, vector<128x128xbf16>
    %c0_1 = arith.constant 0 : index
    %c0_2 = arith.constant 0 : index
    %c0_3 = arith.constant 0 : index
    %c0_4 = arith.constant 0 : index
    %1 = vector.load %arg1[%c0_1, %c0_2, %c0_3, %c0_4] : memref<1x4x196x128xbf16, #tpu.memory_space<vmem>>, vector<1x1x196x128xbf16>
    %2 = vector.shape_cast %1 : vector<1x1x196x128xbf16> to vector<196x128xbf16>
    %cst = arith.constant dense<0.000000e+00> : vector<196x128xf32>
    %3 = tpu.matmul %2, %0, %cst {dimension_numbers = #tpu.dot_dimension_numbers<[1], [0], [0], [1], [0, 0, 1, 1], [], []>} : vector<196x128xbf16>, vector<128x128xbf16>, vector<196x128xf32> -> vector<196x128xf32>
    %c0_5 = arith.constant 0 : index
    %c1 = arith.constant 1 : index
    %c0_6 = arith.constant 0 : index
    %c0_7 = arith.constant 0 : index
    %4 = vector.load %arg1[%c0_5, %c1, %c0_6, %c0_7] : memref<1x4x196x128xbf16, #tpu.memory_space<vmem>>, vector<1x1x196x128xbf16>
    %5 = vector.shape_cast %4 : vector<1x1x196x128xbf16> to vector<196x128xbf16>
    %cst_8 = arith.constant dense<0.000000e+00> : vector<196x128xf32>
    %6 = tpu.matmul %5, %0, %cst_8 {dimension_numbers = #tpu.dot_dimension_numbers<[1], [0], [0], [1], [0, 0, 1, 1], [], []>} : vector<196x128xbf16>, vector<128x128xbf16>, vector<196x128xf32> -> vector<196x128xf32>
    %7 = arith.maximumf %3, %6 : vector<196x128xf32>
    %c0_9 = arith.constant 0 : index
    %c2 = arith.constant 2 : index
    %c0_10 = arith.constant 0 : index
    %c0_11 = arith.constant 0 : index
    %8 = vector.load %arg1[%c0_9, %c2, %c0_10, %c0_11] : memref<1x4x196x128xbf16, #tpu.memory_space<vmem>>, vector<1x1x196x128xbf16>
    %9 = vector.shape_cast %8 : vector<1x1x196x128xbf16> to vector<196x128xbf16>
    %cst_12 = arith.constant dense<0.000000e+00> : vector<196x128xf32>
    %10 = tpu.matmul %9, %0, %cst_12 {dimension_numbers = #tpu.dot_dimension_numbers<[1], [0], [0], [1], [0, 0, 1, 1], [], []>} : vector<196x128xbf16>, vector<128x128xbf16>, vector<196x128xf32> -> vector<196x128xf32>
    %11 = arith.maximumf %7, %10 : vector<196x128xf32>
    %c0_13 = arith.constant 0 : index
    %c3 = arith.constant 3 : index
    %c0_14 = arith.constant 0 : index
    %c0_15 = arith.constant 0 : index
    %12 = vector.load %arg1[%c0_13, %c3, %c0_14, %c0_15] : memref<1x4x196x128xbf16, #tpu.memory_space<vmem>>, vector<1x1x196x128xbf16>
    %13 = vector.shape_cast %12 : vector<1x1x196x128xbf16> to vector<196x128xbf16>
    %cst_16 = arith.constant dense<0.000000e+00> : vector<196x128xf32>
    %14 = tpu.matmul %13, %0, %cst_16 {dimension_numbers = #tpu.dot_dimension_numbers<[1], [0], [0], [1], [0, 0, 1, 1], [], []>} : vector<196x128xbf16>, vector<128x128xbf16>, vector<196x128xf32> -> vector<196x128xf32>
    %15 = arith.maximumf %11, %14 : vector<196x128xf32>
    %c0_17 = arith.constant 0 : index
    %c0_18 = arith.constant 0 : index
    %16 = vector.load %arg3[%c0_17, %c0_18] : memref<1x128xf32, #tpu.memory_space<vmem>>, vector<1x128xf32>
    %17 = vector.broadcast %16 : vector<1x128xf32> to vector<196x128xf32>
    %18 = arith.addf %15, %17 : vector<196x128xf32>
    %cst_19 = arith.constant 0.000000e+00 : f32
    %19 = vector.broadcast %cst_19 : f32 to vector<196x128xf32>
    %20 = arith.maximumf %18, %19 : vector<196x128xf32>
    %21 = arith.truncf %20 : vector<196x128xf32> to vector<196x128xbf16>
    %c0_20 = arith.constant 0 : index
    %c0_21 = arith.constant 0 : index
    %c0_22 = arith.constant 0 : index
    %22 = vector.load %arg4[%c0_20, %c0_21, %c0_22] : memref<1x196x128xbf16, #tpu.memory_space<vmem>>, vector<1x196x128xbf16>
    %23 = vector.shape_cast %22 : vector<1x196x128xbf16> to vector<196x128xbf16>
    %24 = vector.shape_cast %21 : vector<196x128xbf16> to vector<1x196x128xbf16>
    tpu.vector_store %arg4[%c0_20, %c0_21, %c0_22], %24 {strides = array<i32>} : memref<1x196x128xbf16, #tpu.memory_space<vmem>>, vector<1x196x128xbf16>,
    return
  }
  func.func @transform_0(%arg0: i32) -> (i32, i32, i32, i32) {
    %c0_i32 = arith.constant 0 : i32
    %c0_i32_0 = arith.constant 0 : i32
    %c0_i32_1 = arith.constant 0 : i32
    %c0_i32_2 = arith.constant 0 : i32
    return %arg0, %c0_i32, %c0_i32_0, %c0_i32_1 : i32, i32, i32, i32
  }
  func.func @transform_1(%arg0: i32) -> (i32, i32) {
    %c0_i32 = arith.constant 0 : i32
    %c0_i32_0 = arith.constant 0 : i32
    %c0_i32_1 = arith.constant 0 : i32
    return %c0_i32, %c0_i32_0 : i32, i32
  }
  func.func @transform_2(%arg0: i32) -> (i32, i32) {
    %c0_i32 = arith.constant 0 : i32
    %c0_i32_0 = arith.constant 0 : i32
    %c0_i32_1 = arith.constant 0 : i32
    return %c0_i32, %c0_i32_0 : i32, i32
  }
  func.func @transform_3(%arg0: i32) -> (i32, i32, i32) {
    %c0_i32 = arith.constant 0 : i32
    %c0_i32_0 = arith.constant 0 : i32
    %c0_i32_1 = arith.constant 0 : i32
    return %arg0, %c0_i32, %c0_i32_0 : i32, i32, i32
  }
}

module attributes {stable_mosaic.version = 11 : i64} {
  func.func @_fc_stack_softmax_kernel(%arg0: memref<2x512xbf16, #tpu.memory_space<vmem>>, %arg1: memref<512x128xbf16, #tpu.memory_space<vmem>>, %arg2: memref<1x128xf32, #tpu.memory_space<vmem>>, %arg3: memref<128x128xbf16, #tpu.memory_space<vmem>>, %arg4: memref<1x128xf32, #tpu.memory_space<vmem>>, %arg5: memref<128x128xbf16, #tpu.memory_space<vmem>>, %arg6: memref<1x128xf32, #tpu.memory_space<vmem>>, %arg7: memref<2x128xf32, #tpu.memory_space<vmem>>) attributes {dimension_semantics = [], scalar_prefetch = 0 : i64, scratch_operands = 0 : i64, tpu.core_type = #tpu.core_type<tc>} {
    %c0 = arith.constant 0 : index
    %c0_0 = arith.constant 0 : index
    %0 = vector.load %arg0[%c0, %c0_0] : memref<2x512xbf16, #tpu.memory_space<vmem>>, vector<2x512xbf16>
    %c0_1 = arith.constant 0 : index
    %c0_2 = arith.constant 0 : index
    %1 = vector.load %arg1[%c0_1, %c0_2] : memref<512x128xbf16, #tpu.memory_space<vmem>>, vector<512x128xbf16>
    %cst = arith.constant dense<0.000000e+00> : vector<2x128xf32>
    %2 = tpu.matmul %0, %1, %cst {dimension_numbers = #tpu.dot_dimension_numbers<[1], [0], [0], [1], [0, 0, 1, 1], [], []>} : vector<2x512xbf16>, vector<512x128xbf16>, vector<2x128xf32> -> vector<2x128xf32>
    %c0_3 = arith.constant 0 : index
    %c0_4 = arith.constant 0 : index
    %3 = vector.load %arg2[%c0_3, %c0_4] : memref<1x128xf32, #tpu.memory_space<vmem>>, vector<1x128xf32>
    %4 = vector.broadcast %3 : vector<1x128xf32> to vector<2x128xf32>
    %5 = arith.addf %2, %4 : vector<2x128xf32>
    %cst_5 = arith.constant 0.000000e+00 : f32
    %6 = vector.broadcast %cst_5 : f32 to vector<2x128xf32>
    %7 = arith.maximumf %5, %6 : vector<2x128xf32>
    %8 = arith.truncf %7 : vector<2x128xf32> to vector<2x128xbf16>
    %c0_6 = arith.constant 0 : index
    %c0_7 = arith.constant 0 : index
    %9 = vector.load %arg3[%c0_6, %c0_7] : memref<128x128xbf16, #tpu.memory_space<vmem>>, vector<128x128xbf16>
    %cst_8 = arith.constant dense<0.000000e+00> : vector<2x128xf32>
    %10 = tpu.matmul %8, %9, %cst_8 {dimension_numbers = #tpu.dot_dimension_numbers<[1], [0], [0], [1], [0, 0, 1, 1], [], []>} : vector<2x128xbf16>, vector<128x128xbf16>, vector<2x128xf32> -> vector<2x128xf32>
    %c0_9 = arith.constant 0 : index
    %c0_10 = arith.constant 0 : index
    %11 = vector.load %arg4[%c0_9, %c0_10] : memref<1x128xf32, #tpu.memory_space<vmem>>, vector<1x128xf32>
    %12 = vector.broadcast %11 : vector<1x128xf32> to vector<2x128xf32>
    %13 = arith.addf %10, %12 : vector<2x128xf32>
    %cst_11 = arith.constant 0.000000e+00 : f32
    %14 = vector.broadcast %cst_11 : f32 to vector<2x128xf32>
    %15 = arith.maximumf %13, %14 : vector<2x128xf32>
    %16 = arith.truncf %15 : vector<2x128xf32> to vector<2x128xbf16>
    %c0_12 = arith.constant 0 : index
    %c0_13 = arith.constant 0 : index
    %17 = vector.load %arg5[%c0_12, %c0_13] : memref<128x128xbf16, #tpu.memory_space<vmem>>, vector<128x128xbf16>
    %cst_14 = arith.constant dense<0.000000e+00> : vector<2x128xf32>
    %18 = tpu.matmul %16, %17, %cst_14 {dimension_numbers = #tpu.dot_dimension_numbers<[1], [0], [0], [1], [0, 0, 1, 1], [], []>} : vector<2x128xbf16>, vector<128x128xbf16>, vector<2x128xf32> -> vector<2x128xf32>
    %c0_15 = arith.constant 0 : index
    %c0_16 = arith.constant 0 : index
    %19 = vector.load %arg6[%c0_15, %c0_16] : memref<1x128xf32, #tpu.memory_space<vmem>>, vector<1x128xf32>
    %20 = vector.broadcast %19 : vector<1x128xf32> to vector<2x128xf32>
    %21 = arith.addf %18, %20 : vector<2x128xf32>
    %22 = tpu.iota {dimensions = array<i32: 1>} : vector<2x128xi32>
    %c2_i32 = arith.constant 2 : i32
    %23 = vector.broadcast %c2_i32 : i32 to vector<2x128xi32>
    %24 = arith.cmpi slt, %22, %23 : vector<2x128xi32>
    %cst_17 = arith.constant 0xFF800000 : f32
    %25 = vector.broadcast %cst_17 : f32 to vector<2x128xf32>
    %26 = arith.select %24, %21, %25 : vector<2x128xi1>, vector<2x128xf32>
    %cst_18 = arith.constant dense<0xFF800000> : vector<2xf32>
    %27 = vector.multi_reduction <maximumf>, %26, %cst_18 [1] : vector<2x128xf32> to vector<2xf32>
    %28 = vector.shape_cast %27 : vector<2xf32> to vector<2x1xf32>
    %29 = vector.broadcast %28 : vector<2x1xf32> to vector<2x128xf32>
    %30 = arith.subf %26, %29 : vector<2x128xf32>
    %31 = math.exp %30 : vector<2x128xf32>
    %cst_19 = arith.constant dense<0.000000e+00> : vector<2xf32>
    %32 = vector.multi_reduction <add>, %31, %cst_19 [1] : vector<2x128xf32> to vector<2xf32>
    %33 = vector.shape_cast %32 : vector<2xf32> to vector<2x1xf32>
    %34 = vector.broadcast %33 : vector<2x1xf32> to vector<2x128xf32>
    %35 = arith.divf %31, %34 : vector<2x128xf32>
    %c0_20 = arith.constant 0 : index
    %c0_21 = arith.constant 0 : index
    %36 = vector.load %arg7[%c0_20, %c0_21] : memref<2x128xf32, #tpu.memory_space<vmem>>, vector<2x128xf32>
    tpu.vector_store %arg7[%c0_20, %c0_21], %35 {strides = array<i32>} : memref<2x128xf32, #tpu.memory_space<vmem>>, vector<2x128xf32>,
    return
  }
}

module attributes {stable_mosaic.version = 11 : i64} {
  func.func @_conv_relu_pool_kernel(%arg0: i32, %arg1: memref<1x4x25x256xbf16, #tpu.memory_space<vmem>>, %arg2: memref<256x128xbf16, #tpu.memory_space<vmem>>, %arg3: memref<1x128xf32, #tpu.memory_space<vmem>>, %arg4: memref<1x25x128xbf16, #tpu.memory_space<vmem>>) attributes {dimension_semantics = [#tpu.dimension_semantics<parallel>], iteration_bounds = array<i64: 2>, scalar_prefetch = 0 : i64, scratch_operands = 0 : i64, tpu.core_type = #tpu.core_type<tc>, window_params = [{transform_indices = @transform_0, window_bounds = array<i64: 1, 4, 25, 256>}, {pipeline_mode = #tpu.pipeline_mode<synchronous>, transform_indices = @transform_1, window_bounds = array<i64: 256, 128>}, {pipeline_mode = #tpu.pipeline_mode<synchronous>, transform_indices = @transform_2, window_bounds = array<i64: 1, 128>}, {transform_indices = @transform_3, window_bounds = array<i64: 1, 25, 128>}]} {
    %c0 = arith.constant 0 : index
    %c0_0 = arith.constant 0 : index
    %0 = vector.load %arg2[%c0, %c0_0] : memref<256x128xbf16, #tpu.memory_space<vmem>>, vector<256x128xbf16>
    %c0_1 = arith.constant 0 : index
    %c0_2 = arith.constant 0 : index
    %c0_3 = arith.constant 0 : index
    %c0_4 = arith.constant 0 : index
    %1 = vector.load %arg1[%c0_1, %c0_2, %c0_3, %c0_4] : memref<1x4x25x256xbf16, #tpu.memory_space<vmem>>, vector<1x1x25x256xbf16>
    %2 = vector.shape_cast %1 : vector<1x1x25x256xbf16> to vector<25x256xbf16>
    %cst = arith.constant dense<0.000000e+00> : vector<25x128xf32>
    %3 = tpu.matmul %2, %0, %cst {dimension_numbers = #tpu.dot_dimension_numbers<[1], [0], [0], [1], [0, 0, 1, 1], [], []>} : vector<25x256xbf16>, vector<256x128xbf16>, vector<25x128xf32> -> vector<25x128xf32>
    %c0_5 = arith.constant 0 : index
    %c1 = arith.constant 1 : index
    %c0_6 = arith.constant 0 : index
    %c0_7 = arith.constant 0 : index
    %4 = vector.load %arg1[%c0_5, %c1, %c0_6, %c0_7] : memref<1x4x25x256xbf16, #tpu.memory_space<vmem>>, vector<1x1x25x256xbf16>
    %5 = vector.shape_cast %4 : vector<1x1x25x256xbf16> to vector<25x256xbf16>
    %cst_8 = arith.constant dense<0.000000e+00> : vector<25x128xf32>
    %6 = tpu.matmul %5, %0, %cst_8 {dimension_numbers = #tpu.dot_dimension_numbers<[1], [0], [0], [1], [0, 0, 1, 1], [], []>} : vector<25x256xbf16>, vector<256x128xbf16>, vector<25x128xf32> -> vector<25x128xf32>
    %7 = arith.maximumf %3, %6 : vector<25x128xf32>
    %c0_9 = arith.constant 0 : index
    %c2 = arith.constant 2 : index
    %c0_10 = arith.constant 0 : index
    %c0_11 = arith.constant 0 : index
    %8 = vector.load %arg1[%c0_9, %c2, %c0_10, %c0_11] : memref<1x4x25x256xbf16, #tpu.memory_space<vmem>>, vector<1x1x25x256xbf16>
    %9 = vector.shape_cast %8 : vector<1x1x25x256xbf16> to vector<25x256xbf16>
    %cst_12 = arith.constant dense<0.000000e+00> : vector<25x128xf32>
    %10 = tpu.matmul %9, %0, %cst_12 {dimension_numbers = #tpu.dot_dimension_numbers<[1], [0], [0], [1], [0, 0, 1, 1], [], []>} : vector<25x256xbf16>, vector<256x128xbf16>, vector<25x128xf32> -> vector<25x128xf32>
    %11 = arith.maximumf %7, %10 : vector<25x128xf32>
    %c0_13 = arith.constant 0 : index
    %c3 = arith.constant 3 : index
    %c0_14 = arith.constant 0 : index
    %c0_15 = arith.constant 0 : index
    %12 = vector.load %arg1[%c0_13, %c3, %c0_14, %c0_15] : memref<1x4x25x256xbf16, #tpu.memory_space<vmem>>, vector<1x1x25x256xbf16>
    %13 = vector.shape_cast %12 : vector<1x1x25x256xbf16> to vector<25x256xbf16>
    %cst_16 = arith.constant dense<0.000000e+00> : vector<25x128xf32>
    %14 = tpu.matmul %13, %0, %cst_16 {dimension_numbers = #tpu.dot_dimension_numbers<[1], [0], [0], [1], [0, 0, 1, 1], [], []>} : vector<25x256xbf16>, vector<256x128xbf16>, vector<25x128xf32> -> vector<25x128xf32>
    %15 = arith.maximumf %11, %14 : vector<25x128xf32>
    %c0_17 = arith.constant 0 : index
    %c0_18 = arith.constant 0 : index
    %16 = vector.load %arg3[%c0_17, %c0_18] : memref<1x128xf32, #tpu.memory_space<vmem>>, vector<1x128xf32>
    %17 = vector.broadcast %16 : vector<1x128xf32> to vector<25x128xf32>
    %18 = arith.addf %15, %17 : vector<25x128xf32>
    %cst_19 = arith.constant 0.000000e+00 : f32
    %19 = vector.broadcast %cst_19 : f32 to vector<25x128xf32>
    %20 = arith.maximumf %18, %19 : vector<25x128xf32>
    %21 = arith.truncf %20 : vector<25x128xf32> to vector<25x128xbf16>
    %c0_20 = arith.constant 0 : index
    %c0_21 = arith.constant 0 : index
    %c0_22 = arith.constant 0 : index
    %22 = vector.load %arg4[%c0_20, %c0_21, %c0_22] : memref<1x25x128xbf16, #tpu.memory_space<vmem>>, vector<1x25x128xbf16>
    %23 = vector.shape_cast %22 : vector<1x25x128xbf16> to vector<25x128xbf16>
    %24 = vector.shape_cast %21 : vector<25x128xbf16> to vector<1x25x128xbf16>
    tpu.vector_store %arg4[%c0_20, %c0_21, %c0_22], %24 {strides = array<i32>} : memref<1x25x128xbf16, #tpu.memory_space<vmem>>, vector<1x25x128xbf16>,
    return
  }
  func.func @transform_0(%arg0: i32) -> (i32, i32, i32, i32) {
    %c0_i32 = arith.constant 0 : i32
    %c0_i32_0 = arith.constant 0 : i32
    %c0_i32_1 = arith.constant 0 : i32
    %c0_i32_2 = arith.constant 0 : i32
    return %arg0, %c0_i32, %c0_i32_0, %c0_i32_1 : i32, i32, i32, i32
  }
  func.func @transform_1(%arg0: i32) -> (i32, i32) {
    %c0_i32 = arith.constant 0 : i32
    %c0_i32_0 = arith.constant 0 : i32
    %c0_i32_1 = arith.constant 0 : i32
    return %c0_i32, %c0_i32_0 : i32, i32
  }
  func.func @transform_2(%arg0: i32) -> (i32, i32) {
    %c0_i32 = arith.constant 0 : i32
    %c0_i32_0 = arith.constant 0 : i32
    %c0_i32_1 = arith.constant 0 : i32
    return %c0_i32, %c0_i32_0 : i32, i32
  }
  func.func @transform_3(%arg0: i32) -> (i32, i32, i32) {
    %c0_i32 = arith.constant 0 : i32
    %c0_i32_0 = arith.constant 0 : i32
    %c0_i32_1 = arith.constant 0 : i32
    return %arg0, %c0_i32, %c0_i32_0 : i32, i32, i32
  }
}

</mosaic_0001>

<llo_original>
// kernel: cnn_forward.3
$region0: #{cnn_forward.3}
  #allocation0 [shape = 'u32[]', space=smem, size = 0x4, offset = 0x4, fixed_abs, tag = 'smem constant byte address 0x4 - core index']
  #allocation1 [shape = 'u32[72,128]{1,0:T(1,128)}', space=vmem, size = 0x9000, scoped, tag = 'internal scratch']
  %s0 = inlined_call_operand.vmem [shape: bf16[2,4,196,128], index: 0, kind: input, shape index: {}]
  %s1 = inlined_call_operand.vmem [shape: bf16[128,128], index: 1, kind: input, shape index: {}]
  %s2 = inlined_call_operand.vmem [shape: f32[1,128], index: 2, kind: input, shape index: {}]
  %s3 = inlined_call_operand.vmem [shape: bf16[2,196,128], index: 3, kind: output, shape index: {}]
  %s4 = sld [smem:[#allocation0]]
  $region45: #{cnn_forward.3} parent=0
    _
  %s6 = ssub.s32 1, %s4
  %s7 = scalar_select 0, %s6, %s4
  loop: start=0, step=1, limit=4
  $region2: #{cnn_forward.3} parent=0 // loop_pre_header
    _
  $region3: #{cnn_forward.3} parent=0 // loop_header
    %s9 = sphi 0, %s13
    %p10 = scmp.ge.s32.totalorder %s9, 4
    %s19 = sphi 0, %s21
    %s22 = sphi 0, %s19
    %s23 = sphi 0, %s22
    %s39 = sphi 0, %s23
    %s43 = sphi 0, %s43
    %s45 = sphi 0, %s43
    %s46 = sphi 0, %s45
    %s60 = sphi 0, %s46
    %s64 = sphi 0, %s64
    %s66 = sphi 0, %s64
    %s67 = sphi 0, %s66
    %s81 = sphi 0, %s67
    %s87 = sphi 0, %s89
    %s90 = sphi 0, %s87
    %s91 = sphi 0, %s90
    %s107 = sphi 0, %s91
  $region4: #{cnn_forward.3} parent=0 // loop_header_branch
    %12 = sbr.rel (%p10) target = $region8
  $region5: #{cnn_forward.3} parent=0 // loop_body
    %s14 = ssub.s32 %s9, 1
    %s15 = ssub.s32 %s9, 2
    %s16 = sadd.s32 %s9, 1
    %s17 = ssub.s32 %s9, %s16
    %p18 = scmp.eq.s32.totalorder %s17, 0
    %s20 = sadd.s32 %s19, 1
    %s21 = scalar_select %p18, %s19, %s20
    %p24 = pneg %p18
    %p25 = scmp.eq.s32.totalorder %s9, 1
    %p26 = por %p24, %p25
    %p27 = scmp.ne.s32.totalorder %s19, %s22
    %p28 = scmp.eq.s32.totalorder %s9, 0
    %p29 = por %p27, %p28
    %p30 = scmp.ne.s32.totalorder %s19, %s22
    %p31 = scmp.eq.s32.totalorder %s14, 1
    %p32 = por %p30, %p31
    %p33 = scmp.ne.s32.totalorder %s22, %s23
    %p34 = scmp.eq.s32.totalorder %s14, 0
    %p35 = por %p33, %p34
    %p36 = scmp.ne.s32.totalorder %s22, %s23
    %p37 = scmp.eq.s32.totalorder %s15, 1
    %p38 = por %p36, %p37
    %p40 = scmp.ne.s32.totalorder %s23, %s39
    %p41 = scmp.eq.s32.totalorder %s15, 0
    %p42 = por %p40, %p41
    %s44 = sadd.s32 %s43, 1
    %p47 = scmp.eq.s32.totalorder %s9, 1
    %p48 = scmp.ne.s32.totalorder %s43, %s45
    %p49 = scmp.eq.s32.totalorder %s9, 0
    %p50 = por %p48, %p49
    %p51 = scmp.ne.s32.totalorder %s43, %s45
    %p52 = scmp.eq.s32.totalorder %s14, 1
    %p53 = por %p51, %p52
    %p54 = scmp.ne.s32.totalorder %s45, %s46
    %p55 = scmp.eq.s32.totalorder %s14, 0
    %p56 = por %p54, %p55
    %p57 = scmp.ne.s32.totalorder %s45, %s46
    %p58 = scmp.eq.s32.totalorder %s15, 1
    %p59 = por %p57, %p58
    %p61 = scmp.ne.s32.totalorder %s46, %s60
    %p62 = scmp.eq.s32.totalorder %s15, 0
    %p63 = por %p61, %p62
    %s65 = sadd.s32 %s64, 1
    %p68 = scmp.eq.s32.totalorder %s9, 1
    %p69 = scmp.ne.s32.totalorder %s64, %s66
    %p70 = scmp.eq.s32.totalorder %s9, 0
    %p71 = por %p69, %p70
    %p72 = scmp.ne.s32.totalorder %s64, %s66
    %p73 = scmp.eq.s32.totalorder %s14, 1
    %p74 = por %p72, %p73
    %p75 = scmp.ne.s32.totalorder %s66, %s67
    %p76 = scmp.eq.s32.totalorder %s14, 0
    %p77 = por %p75, %p76
    %p78 = scmp.ne.s32.totalorder %s66, %s67
    %p79 = scmp.eq.s32.totalorder %s15, 1
    %p80 = por %p78, %p79
    %p82 = scmp.ne.s32.totalorder %s67, %s81
    %p83 = scmp.eq.s32.totalorder %s15, 0
    %p84 = por %p82, %p83
    %s85 = ssub.s32 %s9, %s16
    %p86 = scmp.eq.s32.totalorder %s85, 0
    %s88 = sadd.s32 %s87, 1
    %s89 = scalar_select %p86, %s87, %s88
    %p92 = pneg %p86
    %p93 = scmp.eq.s32.totalorder %s9, 1
    %p94 = por %p92, %p93
    %p95 = scmp.ne.s32.totalorder %s87, %s90
    %p96 = scmp.eq.s32.totalorder %s9, 0
    %p97 = por %p95, %p96
    %p98 = scmp.ne.s32.totalorder %s87, %s90
    %p99 = scmp.eq.s32.totalorder %s14, 1
    %p100 = por %p98, %p99
    %p101 = scmp.ne.s32.totalorder %s90, %s91
    %p102 = scmp.eq.s32.totalorder %s14, 0
    %p103 = por %p101, %p102
    %p104 = scmp.ne.s32.totalorder %s90, %s91
    %p105 = scmp.eq.s32.totalorder %s15, 1
    %p106 = por %p104, %p105
    %p108 = scmp.ne.s32.totalorder %s91, %s107
    %p109 = scmp.eq.s32.totalorder %s15, 0
    %p110 = por %p108, %p109
    %p111 = scmp.le.s32.totalorder 1, %s9
    %p112 = scmp.lt.s32.totalorder %s9, 3
    %p113 = pnand %p111, %p112
    %p114 = pneg %p113
    // Predicated region
    $region9: #{cnn_forward.3} parent=5 // pred_check
      _
    $region10: #{cnn_forward.3} parent=5 // pred_check_branch
      %116 = sbr.rel (%p113) target = $region12
    $region11: #{cnn_forward.3} parent=5 // pred_region
      %s117 = ssub.s32 %s9, 1
      // Predicated region
      $region13: #{cnn_forward.3} parent=11 // pred_check
        %p118 = pneg %p56
      $region14: #{cnn_forward.3} parent=11 // pred_check_branch
        %120 = sbr.rel (%p118) target = $region16
      $region15: #{cnn_forward.3} parent=11 // pred_region
        _
      $region16: #{cnn_forward.3} parent=11 // pred_fallthru
        _
      // Predicated region
      $region17: #{cnn_forward.3} parent=11 // pred_check
        %p121 = pneg %p77
      $region18: #{cnn_forward.3} parent=11 // pred_check_branch
        %123 = sbr.rel (%p121) target = $region20
      $region19: #{cnn_forward.3} parent=11 // pred_region
        _
      $region20: #{cnn_forward.3} parent=11 // pred_fallthru
        _
    $region12: #{cnn_forward.3} parent=5 // pred_fallthru
      _
    %p124 = scmp.lt.s32.totalorder %s9, 2
    // Predicated region
    $region21: #{cnn_forward.3} parent=5 // pred_check
      %p125 = pneg %p124
    $region22: #{cnn_forward.3} parent=5 // pred_check_branch
      %127 = sbr.rel (%p125) target = $region24
    $region23: #{cnn_forward.3} parent=5 // pred_region
      // Predicated region
      $region25: #{cnn_forward.3} parent=23 // pred_check
        %p128 = pneg %p29
      $region26: #{cnn_forward.3} parent=23 // pred_check_branch
        %130 = sbr.rel (%p128) target = $region28
      $region27: #{cnn_forward.3} parent=23 // pred_region
        %p131 = scmp.lt.s32.totalorder %s9, 1
        %s132 = scalar_select %p131, %s9, 1
        %s133 = smul.addr %s132, 100
        %s134 = smul.addr %s133, 4
        %s135 = scalar_lea.vmem %s0, %s134
      $region28: #{cnn_forward.3} parent=23 // pred_fallthru
        _
    $region24: #{cnn_forward.3} parent=5 // pred_fallthru
      _
    %p136 = scmp.le.s32.totalorder 1, %s9
    %p137 = scmp.lt.s32.totalorder %s9, 3
    %p138 = pnand %p136, %p137
    %p139 = pneg %p138
    // Predicated region
    $region29: #{cnn_forward.3} parent=5 // pred_check
      _
    $region30: #{cnn_forward.3} parent=5 // pred_check_branch
      %141 = sbr.rel (%p138) target = $region32
    $region31: #{cnn_forward.3} parent=5 // pred_region
      %s142 = ssub.s32 %s9, 1
      %p143 = scmp.lt.s32.totalorder %s14, 1
      %s144 = scalar_select %p143, %s14, 1
      %s145 = smul.addr %s144, 100
      %s146 = smul.addr %s145, 4
      %s147 = scalar_lea.vmem %s0, %s146
      %p148 = pneg %p35
      %p149 = pneg %p32
      %p150 = pneg %p56
      %p151 = pneg %p53
      %p152 = pneg %p77
      %p153 = pneg %p74
      %p154 = pneg %p103
      %p155 = pneg %p100
      %p156 = scmp.lt.s32.totalorder %s14, 1
      %s157 = scalar_select %p156, %s14, 1
      %s158 = smul.addr %s157, 25
      %s159 = smul.addr %s158, 4
      %s160 = scalar_lea.vmem %s3, %s159
      %p161 = scmp.lt.s32.totalorder %s14, 1
      %s162 = scalar_select %p161, %s14, 1
      %s163 = smul.addr %s162, 100
      %s164 = smul.addr %s163, 4
      %s165 = scalar_lea.vmem %s0, %s164
      %p166 = scmp.lt.s32.totalorder %s14, 1
      %s167 = scalar_select %p166, %s14, 1
      %s168 = smul.addr %s167, 25
      %s169 = smul.addr %s168, 4
      %s170 = scalar_lea.vmem %s3, %s169
      %v171 = vld [vmem:[%s1] sm:$0xf]
      %v172 = vld [vmem:[%s1 + $0x4] sm:$0xf]
      %v173 = vld [vmem:[%s1 + $0x8] sm:$0xf]
      %v174 = vld [vmem:[%s1 + $0xc] sm:$0xf]
      %v175 = vld [vmem:[%s1 + $0x10] sm:$0xf]
      %v176 = vld [vmem:[%s1 + $0x14] sm:$0xf]
      %v177 = vld [vmem:[%s1 + $0x18] sm:$0xf]
      %v178 = vld [vmem:[%s1 + $0x1c] sm:$0xf]
      %v179 = vld [vmem:[%s1 + $0x20] sm:$0xf]
      %v180 = vld [vmem:[%s1 + $0x24] sm:$0xf]
      %v181 = vld [vmem:[%s1 + $0x28] sm:$0xf]
      %v182 = vld [vmem:[%s1 + $0x2c] sm:$0xf]
      %v183 = vld [vmem:[%s1 + $0x30] sm:$0xf]
      %v184 = vld [vmem:[%s1 + $0x34] sm:$0xf]
      %v185 = vld [vmem:[%s1 + $0x38] sm:$0xf]
      %v186 = vld [vmem:[%s1 + $0x3c] sm:$0xf]
      %v187 = vld [vmem:[%s165] sm:$0xf]
      %v188 = vld [vmem:[%s165 + $0x4] sm:$0xf]
      %v189 = vld [vmem:[%s165 + $0x8] sm:$0xf]
      %v190 = vld [vmem:[%s165 + $0xc] sm:$0xf]
      %v191 = vld [vmem:[%s165 + $0x10] sm:$0xf]
      %v192 = vld [vmem:[%s165 + $0x14] sm:$0xf]
      %v193 = vld [vmem:[%s165 + $0x18] sm:$0xf]
      %v194 = vld [vmem:[%s165 + $0x1c] sm:$0xf]
      %v195 = vld [vmem:[%s165 + $0x20] sm:$0xf]
      %v196 = vld [vmem:[%s165 + $0x24] sm:$0xf]
      %v197 = vld [vmem:[%s165 + $0x28] sm:$0xf]
      %v198 = vld [vmem:[%s165 + $0x2c] sm:$0xf]
      %v199 = vld [vmem:[%s165 + $0x30] sm:$0xf]
      %v200 = vld [vmem:[%s165 + $0x34] sm:$0xf]
      %v201 = vld [vmem:[%s165 + $0x38] sm:$0xf]
      %v202 = vld [vmem:[%s165 + $0x3c] sm:$0xf]
      %v203 = vld [vmem:[%s165 + $0x40] sm:$0xf]
      %v204 = vld [vmem:[%s165 + $0x44] sm:$0xf]
      %v205 = vld [vmem:[%s165 + $0x48] sm:$0xf]
      %v206 = vld [vmem:[%s165 + $0x4c] sm:$0xf]
      %v207 = vld [vmem:[%s165 + $0x50] sm:$0xf]
      %v208 = vld [vmem:[%s165 + $0x54] sm:$0xf]
      %v209 = vld [vmem:[%s165 + $0x58] sm:$0xf]
      %v210 = vld [vmem:[%s165 + $0x5c] sm:$0xf]
      %v211 = vld [vmem:[%s165 + $0x60] sm:$0x3]
      %v237 = vunpack.c.l.b16 %v187
      %v238 = vunpack.c.l.b16 %v188
      %v239 = vunpack.c.l.b16 %v189
      %v240 = vunpack.c.l.b16 %v190
      %v241 = vunpack.c.l.b16 %v191
      %v242 = vunpack.c.l.b16 %v192
      %v243 = vunpack.c.l.b16 %v193
      %v244 = vunpack.c.l.b16 %v194
      %v245 = vunpack.c.l.b16 %v195
      %v246 = vunpack.c.l.b16 %v196
      %v247 = vunpack.c.l.b16 %v197
      %v248 = vunpack.c.l.b16 %v198
      %v249 = vunpack.c.l.b16 %v199
      %v250 = vunpack.c.l.b16 %v200
      %v251 = vunpack.c.l.b16 %v201
      %v252 = vunpack.c.l.b16 %v202
      %v253 = vunpack.c.l.b16 %v203
      %v254 = vunpack.c.l.b16 %v204
      %v255 = vunpack.c.l.b16 %v205
      %v256 = vunpack.c.l.b16 %v206
      %v257 = vunpack.c.l.b16 %v207
      %v258 = vunpack.c.l.b16 %v208
      %v259 = vunpack.c.l.b16 %v209
      %v260 = vunpack.c.l.b16 %v210
      %v261 = vunpack.c.l.b16 %v211
      %v262 = vpack.c.b16 %v238, %v237
      %v263 = vpack.c.b16 %v240, %v239
      %v264 = vpack.c.b16 %v242, %v241
      %v265 = vpack.c.b16 %v244, %v243
      %v266 = vpack.c.b16 %v246, %v245
      %v267 = vpack.c.b16 %v248, %v247
      %v268 = vpack.c.b16 %v250, %v249
      %v269 = vpack.c.b16 %v252, %v251
      %v270 = vpack.c.b16 %v254, %v253
      %v271 = vpack.c.b16 %v256, %v255
      %v272 = vpack.c.b16 %v258, %v257
      %v273 = vpack.c.b16 %v260, %v259
      %v274 = vpack.c.b16 %v261, %v261
      %v304 = vunpack.c.l.b16 %v171
      %v305 = vunpack.c.l.b16 %v172
      %v306 = vunpack.c.l.b16 %v173
      %v307 = vunpack.c.l.b16 %v174
      %v308 = vunpack.c.l.b16 %v175
      %v309 = vunpack.c.l.b16 %v176
      %v310 = vunpack.c.l.b16 %v177
      %v311 = vunpack.c.l.b16 %v178
      %v312 = vunpack.c.l.b16 %v179
      %v313 = vunpack.c.l.b16 %v180
      %v314 = vunpack.c.l.b16 %v181
      %v315 = vunpack.c.l.b16 %v182
      %v316 = vunpack.c.l.b16 %v183
      %v317 = vunpack.c.l.b16 %v184
      %v318 = vunpack.c.l.b16 %v185
      %v319 = vunpack.c.l.b16 %v186
      %v320 = vpack.c.b16 %v305, %v304
      %v321 = vpack.c.b16 %v307, %v306
      %v322 = vpack.c.b16 %v309, %v308
      %v323 = vpack.c.b16 %v311, %v310
      %v324 = vpack.c.b16 %v313, %v312
      %v325 = vpack.c.b16 %v315, %v314
      %v326 = vpack.c.b16 %v317, %v316
      %v327 = vpack.c.b16 %v319, %v318
      %336 = vmatpush.bf16.msra.mxu0 %v327
      %337 = vmatpush.bf16.msra.mxu0 %v326
      %338 = vmatpush.bf16.msra.mxu0 %v325
      %339 = vmatpush.bf16.msra.mxu0 %v324
      %340 = vmatpush.bf16.msra.mxu0 %v323
      %341 = vmatpush.bf16.msra.mxu0 %v322
      %342 = vmatpush.bf16.msra.mxu0 %v321
      %343 = vmatpush.bf16.msra.mxu0 %v320
      %344 = vmatmul.bf16.gmra.mxu0 %v262
      %v345 = vpop.f32.mrf.mxu0
      %v346 = vadd.f32 0.0, %v345
      %v347 = vpop.f32.mrf.mxu0
      %v348 = vadd.f32 0.0, %v347
      %349 = vmatmul.bf16.gmra.mxu0 %v263
      %v350 = vpop.f32.mrf.mxu0
      %v351 = vadd.f32 0.0, %v350
      %v352 = vpop.f32.mrf.mxu0
      %v353 = vadd.f32 0.0, %v352
      %354 = vmatmul.bf16.gmra.mxu0 %v264
      %v355 = vpop.f32.mrf.mxu0
      %v356 = vadd.f32 0.0, %v355
      %v357 = vpop.f32.mrf.mxu0
      %v358 = vadd.f32 0.0, %v357
      %359 = vmatmul.bf16.gmra.mxu0 %v265
      %v360 = vpop.f32.mrf.mxu0
      %v361 = vadd.f32 0.0, %v360
      %v362 = vpop.f32.mrf.mxu0
      %v363 = vadd.f32 0.0, %v362
      %364 = vmatmul.bf16.gmra.mxu0 %v266
      %v365 = vpop.f32.mrf.mxu0
      %v366 = vadd.f32 0.0, %v365
      %v367 = vpop.f32.mrf.mxu0
      %v368 = vadd.f32 0.0, %v367
      %369 = vmatmul.bf16.gmra.mxu0 %v267
      %v370 = vpop.f32.mrf.mxu0
      %v371 = vadd.f32 0.0, %v370
      %v372 = vpop.f32.mrf.mxu0
      %v373 = vadd.f32 0.0, %v372
      %374 = vmatmul.bf16.gmra.mxu0 %v268
      %v375 = vpop.f32.mrf.mxu0
      %v376 = vadd.f32 0.0, %v375
      %v377 = vpop.f32.mrf.mxu0
      %v378 = vadd.f32 0.0, %v377
      %379 = vmatmul.bf16.gmra.mxu0 %v269
      %v380 = vpop.f32.mrf.mxu0
      %v381 = vadd.f32 0.0, %v380
      %v382 = vpop.f32.mrf.mxu0
      %v383 = vadd.f32 0.0, %v382
      %384 = vmatmul.bf16.gmra.mxu0 %v270
      %v385 = vpop.f32.mrf.mxu0
      %v386 = vadd.f32 0.0, %v385
      %v387 = vpop.f32.mrf.mxu0
      %v388 = vadd.f32 0.0, %v387
      %389 = vmatmul.bf16.gmra.mxu0 %v271
      %v390 = vpop.f32.mrf.mxu0
      %v391 = vadd.f32 0.0, %v390
      %v392 = vpop.f32.mrf.mxu0
      %v393 = vadd.f32 0.0, %v392
      %394 = vmatmul.bf16.gmra.mxu0 %v272
      %v395 = vpop.f32.mrf.mxu0
      %v396 = vadd.f32 0.0, %v395
      %v397 = vpop.f32.mrf.mxu0
      %v398 = vadd.f32 0.0, %v397
      %399 = vmatmul.bf16.gmra.mxu0 %v273
      %v400 = vpop.f32.mrf.mxu0
      %v401 = vadd.f32 0.0, %v400
      %v402 = vpop.f32.mrf.mxu0
      %v403 = vadd.f32 0.0, %v402
      %404 = vmatmul.bf16.gmra.mxu0 %v274
      %v405 = vpop.f32.mrf.mxu0
      %v406 = vadd.f32 0.0, %v405
      %v407 = vpop.f32.mrf.mxu0
      %408 = vdwg.mxu0
      %s409 = scalar_lea.vmem %s165, 100
      %v410 = vld [vmem:[%s409] sm:$0xf]
      %v411 = vld [vmem:[%s409 + $0x4] sm:$0xf]
      %v412 = vld [vmem:[%s409 + $0x8] sm:$0xf]
      %v413 = vld [vmem:[%s409 + $0xc] sm:$0xf]
      %v414 = vld [vmem:[%s409 + $0x10] sm:$0xf]
      %v415 = vld [vmem:[%s409 + $0x14] sm:$0xf]
      %v416 = vld [vmem:[%s409 + $0x18] sm:$0xf]
      %v417 = vld [vmem:[%s409 + $0x1c] sm:$0xf]
      %v418 = vld [vmem:[%s409 + $0x20] sm:$0xf]
      %v419 = vld [vmem:[%s409 + $0x24] sm:$0xf]
      %v420 = vld [vmem:[%s409 + $0x28] sm:$0xf]
      %v421 = vld [vmem:[%s409 + $0x2c] sm:$0xf]
      %v422 = vld [vmem:[%s409 + $0x30] sm:$0xf]
      %v423 = vld [vmem:[%s409 + $0x34] sm:$0xf]
      %v424 = vld [vmem:[%s409 + $0x38] sm:$0xf]
      %v425 = vld [vmem:[%s409 + $0x3c] sm:$0xf]
      %v426 = vld [vmem:[%s409 + $0x40] sm:$0xf]
      %v427 = vld [vmem:[%s409 + $0x44] sm:$0xf]
      %v428 = vld [vmem:[%s409 + $0x48] sm:$0xf]
      %v429 = vld [vmem:[%s409 + $0x4c] sm:$0xf]
      %v430 = vld [vmem:[%s409 + $0x50] sm:$0xf]
      %v431 = vld [vmem:[%s409 + $0x54] sm:$0xf]
      %v432 = vld [vmem:[%s409 + $0x58] sm:$0xf]
      %v433 = vld [vmem:[%s409 + $0x5c] sm:$0xf]
      %v434 = vld [vmem:[%s409 + $0x60] sm:$0x3]
      %v460 = vunpack.c.l.b16 %v410
      %v461 = vunpack.c.l.b16 %v411
      %v462 = vunpack.c.l.b16 %v412
      %v463 = vunpack.c.l.b16 %v413
      %v464 = vunpack.c.l.b16 %v414
      %v465 = vunpack.c.l.b16 %v415
      %v466 = vunpack.c.l.b16 %v416
      %v467 = vunpack.c.l.b16 %v417
      %v468 = vunpack.c.l.b16 %v418
      %v469 = vunpack.c.l.b16 %v419
      %v470 = vunpack.c.l.b16 %v420
      %v471 = vunpack.c.l.b16 %v421
      %v472 = vunpack.c.l.b16 %v422
      %v473 = vunpack.c.l.b16 %v423
      %v474 = vunpack.c.l.b16 %v424
      %v475 = vunpack.c.l.b16 %v425
      %v476 = vunpack.c.l.b16 %v426
      %v477 = vunpack.c.l.b16 %v427
      %v478 = vunpack.c.l.b16 %v428
      %v479 = vunpack.c.l.b16 %v429
      %v480 = vunpack.c.l.b16 %v430
      %v481 = vunpack.c.l.b16 %v431
      %v482 = vunpack.c.l.b16 %v432
      %v483 = vunpack.c.l.b16 %v433
      %v484 = vunpack.c.l.b16 %v434
      %v485 = vpack.c.b16 %v461, %v460
      %v486 = vpack.c.b16 %v463, %v462
      %v487 = vpack.c.b16 %v465, %v464
      %v488 = vpack.c.b16 %v467, %v466
      %v489 = vpack.c.b16 %v469, %v468
      %v490 = vpack.c.b16 %v471, %v470
      %v491 = vpack.c.b16 %v473, %v472
      %v492 = vpack.c.b16 %v475, %v474
      %v493 = vpack.c.b16 %v477, %v476
      %v494 = vpack.c.b16 %v479, %v478
      %v495 = vpack.c.b16 %v481, %v480
      %v496 = vpack.c.b16 %v483, %v482
      %v497 = vpack.c.b16 %v484, %v484
      %511 = vmatpush.bf16.msra.mxu0 %v327
      %512 = vmatpush.bf16.msra.mxu0 %v326
      %513 = vmatpush.bf16.msra.mxu0 %v325
      %514 = vmatpush.bf16.msra.mxu0 %v324
      %515 = vmatpush.bf16.msra.mxu0 %v323
      %516 = vmatpush.bf16.msra.mxu0 %v322
      %517 = vmatpush.bf16.msra.mxu0 %v321
      %518 = vmatpush.bf16.msra.mxu0 %v320
      %519 = vmatmul.bf16.gmra.mxu0 %v485
      %v520 = vpop.f32.mrf.mxu0
      %v521 = vadd.f32 0.0, %v520
      %v522 = vpop.f32.mrf.mxu0
      %v523 = vadd.f32 0.0, %v522
      %524 = vmatmul.bf16.gmra.mxu0 %v486
      %v525 = vpop.f32.mrf.mxu0
      %v526 = vadd.f32 0.0, %v525
      %v527 = vpop.f32.mrf.mxu0
      %v528 = vadd.f32 0.0, %v527
      %529 = vmatmul.bf16.gmra.mxu0 %v487
      %v530 = vpop.f32.mrf.mxu0
      %v531 = vadd.f32 0.0, %v530
      %v532 = vpop.f32.mrf.mxu0
      %v533 = vadd.f32 0.0, %v532
      %534 = vmatmul.bf16.gmra.mxu0 %v488
      %v535 = vpop.f32.mrf.mxu0
      %v536 = vadd.f32 0.0, %v535
      %v537 = vpop.f32.mrf.mxu0
      %v538 = vadd.f32 0.0, %v537
      %539 = vmatmul.bf16.gmra.mxu0 %v489
      %v540 = vpop.f32.mrf.mxu0
      %v541 = vadd.f32 0.0, %v540
      %v542 = vpop.f32.mrf.mxu0
      %v543 = vadd.f32 0.0, %v542
      %544 = vmatmul.bf16.gmra.mxu0 %v490
      %v545 = vpop.f32.mrf.mxu0
      %v546 = vadd.f32 0.0, %v545
      %v547 = vpop.f32.mrf.mxu0
      %v548 = vadd.f32 0.0, %v547
      %549 = vmatmul.bf16.gmra.mxu0 %v491
      %v550 = vpop.f32.mrf.mxu0
      %v551 = vadd.f32 0.0, %v550
      %v552 = vpop.f32.mrf.mxu0
      %v553 = vadd.f32 0.0, %v552
      %554 = vmatmul.bf16.gmra.mxu0 %v492
      %v555 = vpop.f32.mrf.mxu0
      %v556 = vadd.f32 0.0, %v555
      %v557 = vpop.f32.mrf.mxu0
      %v558 = vadd.f32 0.0, %v557
      %559 = vmatmul.bf16.gmra.mxu0 %v493
      %v560 = vpop.f32.mrf.mxu0
      %v561 = vadd.f32 0.0, %v560
      %v562 = vpop.f32.mrf.mxu0
      %v563 = vadd.f32 0.0, %v562
      %564 = vmatmul.bf16.gmra.mxu0 %v494
      %v565 = vpop.f32.mrf.mxu0
      %v566 = vadd.f32 0.0, %v565
      %v567 = vpop.f32.mrf.mxu0
      %v568 = vadd.f32 0.0, %v567
      %569 = vmatmul.bf16.gmra.mxu0 %v495
      %v570 = vpop.f32.mrf.mxu0
      %v571 = vadd.f32 0.0, %v570
      %v572 = vpop.f32.mrf.mxu0
      %v573 = vadd.f32 0.0, %v572
      %574 = vmatmul.bf16.gmra.mxu0 %v496
      %v575 = vpop.f32.mrf.mxu0
      %v576 = vadd.f32 0.0, %v575
      %v577 = vpop.f32.mrf.mxu0
      %v578 = vadd.f32 0.0, %v577
      %579 = vmatmul.bf16.gmra.mxu0 %v497
      %v580 = vpop.f32.mrf.mxu0
      %v581 = vadd.f32 0.0, %v580
      %v582 = vpop.f32.mrf.mxu0
      %583 = vdwg.mxu0
      %v584 = vmax.f32 %v346, %v521
      %v585 = vmax.f32 %v348, %v523
      %v586 = vmax.f32 %v351, %v526
      %v587 = vmax.f32 %v353, %v528
      %v588 = vmax.f32 %v356, %v531
      %v589 = vmax.f32 %v358, %v533
      %v590 = vmax.f32 %v361, %v536
      %v591 = vmax.f32 %v363, %v538
      %v592 = vmax.f32 %v366, %v541
      %v593 = vmax.f32 %v368, %v543
      %v594 = vmax.f32 %v371, %v546
      %v595 = vmax.f32 %v373, %v548
      %v596 = vmax.f32 %v376, %v551
      %v597 = vmax.f32 %v378, %v553
      %v598 = vmax.f32 %v381, %v556
      %v599 = vmax.f32 %v383, %v558
      %v600 = vmax.f32 %v386, %v561
      %v601 = vmax.f32 %v388, %v563
      %v602 = vmax.f32 %v391, %v566
      %v603 = vmax.f32 %v393, %v568
      %v604 = vmax.f32 %v396, %v571
      %v605 = vmax.f32 %v398, %v573
      %v606 = vmax.f32 %v401, %v576
      %v607 = vmax.f32 %v403, %v578
      %v608 = vmax.f32 %v406, %v581
      %s609 = scalar_lea.vmem %s165, 200
      %v610 = vld [vmem:[%s609] sm:$0xf]
      %v611 = vld [vmem:[%s609 + $0x4] sm:$0xf]
      %v612 = vld [vmem:[%s609 + $0x8] sm:$0xf]
      %v613 = vld [vmem:[%s609 + $0xc] sm:$0xf]
      %v614 = vld [vmem:[%s609 + $0x10] sm:$0xf]
      %v615 = vld [vmem:[%s609 + $0x14] sm:$0xf]
      %v616 = vld [vmem:[%s609 + $0x18] sm:$0xf]
      %v617 = vld [vmem:[%s609 + $0x1c] sm:$0xf]
      %v618 = vld [vmem:[%s609 + $0x20] sm:$0xf]
      %v619 = vld [vmem:[%s609 + $0x24] sm:$0xf]
      %v620 = vld [vmem:[%s609 + $0x28] sm:$0xf]
      %v621 = vld [vmem:[%s609 + $0x2c] sm:$0xf]
      %v622 = vld [vmem:[%s609 + $0x30] sm:$0xf]
      %v623 = vld [vmem:[%s609 + $0x34] sm:$0xf]
      %v624 = vld [vmem:[%s609 + $0x38] sm:$0xf]
      %v625 = vld [vmem:[%s609 + $0x3c] sm:$0xf]
      %v626 = vld [vmem:[%s609 + $0x40] sm:$0xf]
      %v627 = vld [vmem:[%s609 + $0x44] sm:$0xf]
      %v628 = vld [vmem:[%s609 + $0x48] sm:$0xf]
      %v629 = vld [vmem:[%s609 + $0x4c] sm:$0xf]
      %v630 = vld [vmem:[%s609 + $0x50] sm:$0xf]
      %v631 = vld [vmem:[%s609 + $0x54] sm:$0xf]
      %v632 = vld [vmem:[%s609 + $0x58] sm:$0xf]
      %v633 = vld [vmem:[%s609 + $0x5c] sm:$0xf]
      %v634 = vld [vmem:[%s609 + $0x60] sm:$0x3]
      %v660 = vunpack.c.l.b16 %v610
      %v661 = vunpack.c.l.b16 %v611
      %v662 = vunpack.c.l.b16 %v612
      %v663 = vunpack.c.l.b16 %v613
      %v664 = vunpack.c.l.b16 %v614
      %v665 = vunpack.c.l.b16 %v615
      %v666 = vunpack.c.l.b16 %v616
      %v667 = vunpack.c.l.b16 %v617
      %v668 = vunpack.c.l.b16 %v618
      %v669 = vunpack.c.l.b16 %v619
      %v670 = vunpack.c.l.b16 %v620
      %v671 = vunpack.c.l.b16 %v621
      %v672 = vunpack.c.l.b16 %v622
      %v673 = vunpack.c.l.b16 %v623
      %v674 = vunpack.c.l.b16 %v624
      %v675 = vunpack.c.l.b16 %v625
      %v676 = vunpack.c.l.b16 %v626
      %v677 = vunpack.c.l.b16 %v627
      %v678 = vunpack.c.l.b16 %v628
      %v679 = vunpack.c.l.b16 %v629
      %v680 = vunpack.c.l.b16 %v630
      %v681 = vunpack.c.l.b16 %v631
      %v682 = vunpack.c.l.b16 %v632
      %v683 = vunpack.c.l.b16 %v633
      %v684 = vunpack.c.l.b16 %v634
      %v685 = vpack.c.b16 %v661, %v660
      %v686 = vpack.c.b16 %v663, %v662
      %v687 = vpack.c.b16 %v665, %v664
      %v688 = vpack.c.b16 %v667, %v666
      %v689 = vpack.c.b16 %v669, %v668
      %v690 = vpack.c.b16 %v671, %v670
      %v691 = vpack.c.b16 %v673, %v672
      %v692 = vpack.c.b16 %v675, %v674
      %v693 = vpack.c.b16 %v677, %v676
      %v694 = vpack.c.b16 %v679, %v678
      %v695 = vpack.c.b16 %v681, %v680
      %v696 = vpack.c.b16 %v683, %v682
      %v697 = vpack.c.b16 %v684, %v684
      %711 = vmatpush.bf16.msra.mxu0 %v327
      %712 = vmatpush.bf16.msra.mxu0 %v326
      %713 = vmatpush.bf16.msra.mxu0 %v325
      %714 = vmatpush.bf16.msra.mxu0 %v324
      %715 = vmatpush.bf16.msra.mxu0 %v323
      %716 = vmatpush.bf16.msra.mxu0 %v322
      %717 = vmatpush.bf16.msra.mxu0 %v321
      %718 = vmatpush.bf16.msra.mxu0 %v320
      %719 = vmatmul.bf16.gmra.mxu0 %v685
      %v720 = vpop.f32.mrf.mxu0
      %v721 = vadd.f32 0.0, %v720
      %v722 = vpop.f32.mrf.mxu0
      %v723 = vadd.f32 0.0, %v722
      %724 = vmatmul.bf16.gmra.mxu0 %v686
      %v725 = vpop.f32.mrf.mxu0
      %v726 = vadd.f32 0.0, %v725
      %v727 = vpop.f32.mrf.mxu0
      %v728 = vadd.f32 0.0, %v727
      %729 = vmatmul.bf16.gmra.mxu0 %v687
      %v730 = vpop.f32.mrf.mxu0
      %v731 = vadd.f32 0.0, %v730
      %v732 = vpop.f32.mrf.mxu0
      %v733 = vadd.f32 0.0, %v732
      %734 = vmatmul.bf16.gmra.mxu0 %v688
      %v735 = vpop.f32.mrf.mxu0
      %v736 = vadd.f32 0.0, %v735
      %v737 = vpop.f32.mrf.mxu0
      %v738 = vadd.f32 0.0, %v737
      %739 = vmatmul.bf16.gmra.mxu0 %v689
      %v740 = vpop.f32.mrf.mxu0
      %v741 = vadd.f32 0.0, %v740
      %v742 = vpop.f32.mrf.mxu0
      %v743 = vadd.f32 0.0, %v742
      %744 = vmatmul.bf16.gmra.mxu0 %v690
      %v745 = vpop.f32.mrf.mxu0
      %v746 = vadd.f32 0.0, %v745
      %v747 = vpop.f32.mrf.mxu0
      %v748 = vadd.f32 0.0, %v747
      %749 = vmatmul.bf16.gmra.mxu0 %v691
      %v750 = vpop.f32.mrf.mxu0
      %v751 = vadd.f32 0.0, %v750
      %v752 = vpop.f32.mrf.mxu0
      %v753 = vadd.f32 0.0, %v752
      %754 = vmatmul.bf16.gmra.mxu0 %v692
      %v755 = vpop.f32.mrf.mxu0
      %v756 = vadd.f32 0.0, %v755
      %v757 = vpop.f32.mrf.mxu0
      %v758 = vadd.f32 0.0, %v757
      %759 = vmatmul.bf16.gmra.mxu0 %v693
      %v760 = vpop.f32.mrf.mxu0
      %v761 = vadd.f32 0.0, %v760
      %v762 = vpop.f32.mrf.mxu0
      %v763 = vadd.f32 0.0, %v762
      %764 = vmatmul.bf16.gmra.mxu0 %v694
      %v765 = vpop.f32.mrf.mxu0
      %v766 = vadd.f32 0.0, %v765
      %v767 = vpop.f32.mrf.mxu0
      %v768 = vadd.f32 0.0, %v767
      %769 = vmatmul.bf16.gmra.mxu0 %v695
      %v770 = vpop.f32.mrf.mxu0
      %v771 = vadd.f32 0.0, %v770
      %v772 = vpop.f32.mrf.mxu0
      %v773 = vadd.f32 0.0, %v772
      %774 = vmatmul.bf16.gmra.mxu0 %v696
      %v775 = vpop.f32.mrf.mxu0
      %v776 = vadd.f32 0.0, %v775
      %v777 = vpop.f32.mrf.mxu0
      %v778 = vadd.f32 0.0, %v777
      %779 = vmatmul.bf16.gmra.mxu0 %v697
      %v780 = vpop.f32.mrf.mxu0
      %v781 = vadd.f32 0.0, %v780
      %v782 = vpop.f32.mrf.mxu0
      %783 = vdwg.mxu0
      %v784 = vmax.f32 %v584, %v721
      %v785 = vmax.f32 %v585, %v723
      %v786 = vmax.f32 %v586, %v726
      %v787 = vmax.f32 %v587, %v728
      %v788 = vmax.f32 %v588, %v731
      %v789 = vmax.f32 %v589, %v733
      %v790 = vmax.f32 %v590, %v736
      %v791 = vmax.f32 %v591, %v738
      %v792 = vmax.f32 %v592, %v741
      %v793 = vmax.f32 %v593, %v743
      %v794 = vmax.f32 %v594, %v746
      %v795 = vmax.f32 %v595, %v748
      %v796 = vmax.f32 %v596, %v751
      %v797 = vmax.f32 %v597, %v753
      %v798 = vmax.f32 %v598, %v756
      %v799 = vmax.f32 %v599, %v758
      %v800 = vmax.f32 %v600, %v761
      %v801 = vmax.f32 %v601, %v763
      %v802 = vmax.f32 %v602, %v766
      %v803 = vmax.f32 %v603, %v768
      %v804 = vmax.f32 %v604, %v771
      %v805 = vmax.f32 %v605, %v773
      %v806 = vmax.f32 %v606, %v776
      %v807 = vmax.f32 %v607, %v778
      %v808 = vmax.f32 %v608, %v781
      %s809 = scalar_lea.vmem %s165, 300
      %v810 = vld [vmem:[%s809] sm:$0xf]
      %v811 = vld [vmem:[%s809 + $0x4] sm:$0xf]
      %v812 = vld [vmem:[%s809 + $0x8] sm:$0xf]
      %v813 = vld [vmem:[%s809 + $0xc] sm:$0xf]
      %v814 = vld [vmem:[%s809 + $0x10] sm:$0xf]
      %v815 = vld [vmem:[%s809 + $0x14] sm:$0xf]
      %v816 = vld [vmem:[%s809 + $0x18] sm:$0xf]
      %v817 = vld [vmem:[%s809 + $0x1c] sm:$0xf]
      %v818 = vld [vmem:[%s809 + $0x20] sm:$0xf]
      %v819 = vld [vmem:[%s809 + $0x24] sm:$0xf]
      %v820 = vld [vmem:[%s809 + $0x28] sm:$0xf]
      %v821 = vld [vmem:[%s809 + $0x2c] sm:$0xf]
      %v822 = vld [vmem:[%s809 + $0x30] sm:$0xf]
      %v823 = vld [vmem:[%s809 + $0x34] sm:$0xf]
      %v824 = vld [vmem:[%s809 + $0x38] sm:$0xf]
      %v825 = vld [vmem:[%s809 + $0x3c] sm:$0xf]
      %v826 = vld [vmem:[%s809 + $0x40] sm:$0xf]
      %v827 = vld [vmem:[%s809 + $0x44] sm:$0xf]
      %v828 = vld [vmem:[%s809 + $0x48] sm:$0xf]
      %v829 = vld [vmem:[%s809 + $0x4c] sm:$0xf]
      %v830 = vld [vmem:[%s809 + $0x50] sm:$0xf]
      %v831 = vld [vmem:[%s809 + $0x54] sm:$0xf]
      %v832 = vld [vmem:[%s809 + $0x58] sm:$0xf]
      %v833 = vld [vmem:[%s809 + $0x5c] sm:$0xf]
      %v834 = vld [vmem:[%s809 + $0x60] sm:$0x3]
      %v860 = vunpack.c.l.b16 %v810
      %v861 = vunpack.c.l.b16 %v811
      %v862 = vunpack.c.l.b16 %v812
      %v863 = vunpack.c.l.b16 %v813
      %v864 = vunpack.c.l.b16 %v814
      %v865 = vunpack.c.l.b16 %v815
      %v866 = vunpack.c.l.b16 %v816
      %v867 = vunpack.c.l.b16 %v817
      %v868 = vunpack.c.l.b16 %v818
      %v869 = vunpack.c.l.b16 %v819
      %v870 = vunpack.c.l.b16 %v820
      %v871 = vunpack.c.l.b16 %v821
      %v872 = vunpack.c.l.b16 %v822
      %v873 = vunpack.c.l.b16 %v823
      %v874 = vunpack.c.l.b16 %v824
      %v875 = vunpack.c.l.b16 %v825
      %v876 = vunpack.c.l.b16 %v826
      %v877 = vunpack.c.l.b16 %v827
      %v878 = vunpack.c.l.b16 %v828
      %v879 = vunpack.c.l.b16 %v829
      %v880 = vunpack.c.l.b16 %v830
      %v881 = vunpack.c.l.b16 %v831
      %v882 = vunpack.c.l.b16 %v832
      %v883 = vunpack.c.l.b16 %v833
      %v884 = vunpack.c.l.b16 %v834
      %v885 = vpack.c.b16 %v861, %v860
      %v886 = vpack.c.b16 %v863, %v862
      %v887 = vpack.c.b16 %v865, %v864
      %v888 = vpack.c.b16 %v867, %v866
      %v889 = vpack.c.b16 %v869, %v868
      %v890 = vpack.c.b16 %v871, %v870
      %v891 = vpack.c.b16 %v873, %v872
      %v892 = vpack.c.b16 %v875, %v874
      %v893 = vpack.c.b16 %v877, %v876
      %v894 = vpack.c.b16 %v879, %v878
      %v895 = vpack.c.b16 %v881, %v880
      %v896 = vpack.c.b16 %v883, %v882
      %v897 = vpack.c.b16 %v884, %v884
      %911 = vmatpush.bf16.msra.mxu0 %v327
      %912 = vmatpush.bf16.msra.mxu0 %v326
      %913 = vmatpush.bf16.msra.mxu0 %v325
      %914 = vmatpush.bf16.msra.mxu0 %v324
      %915 = vmatpush.bf16.msra.mxu0 %v323
      %916 = vmatpush.bf16.msra.mxu0 %v322
      %917 = vmatpush.bf16.msra.mxu0 %v321
      %918 = vmatpush.bf16.msra.mxu0 %v320
      %919 = vmatmul.bf16.gmra.mxu0 %v885
      %v920 = vpop.f32.mrf.mxu0
      %v921 = vadd.f32 0.0, %v920
      %v922 = vpop.f32.mrf.mxu0
      %v923 = vadd.f32 0.0, %v922
      %924 = vmatmul.bf16.gmra.mxu0 %v886
      %v925 = vpop.f32.mrf.mxu0
      %v926 = vadd.f32 0.0, %v925
      %v927 = vpop.f32.mrf.mxu0
      %v928 = vadd.f32 0.0, %v927
      %929 = vmatmul.bf16.gmra.mxu0 %v887
      %v930 = vpop.f32.mrf.mxu0
      %v931 = vadd.f32 0.0, %v930
      %v932 = vpop.f32.mrf.mxu0
      %v933 = vadd.f32 0.0, %v932
      %934 = vmatmul.bf16.gmra.mxu0 %v888
      %v935 = vpop.f32.mrf.mxu0
      %v936 = vadd.f32 0.0, %v935
      %v937 = vpop.f32.mrf.mxu0
      %v938 = vadd.f32 0.0, %v937
      %939 = vmatmul.bf16.gmra.mxu0 %v889
      %v940 = vpop.f32.mrf.mxu0
      %v941 = vadd.f32 0.0, %v940
      %v942 = vpop.f32.mrf.mxu0
      %v943 = vadd.f32 0.0, %v942
      %944 = vmatmul.bf16.gmra.mxu0 %v890
      %v945 = vpop.f32.mrf.mxu0
      %v946 = vadd.f32 0.0, %v945
      %v947 = vpop.f32.mrf.mxu0
      %v948 = vadd.f32 0.0, %v947
      %949 = vmatmul.bf16.gmra.mxu0 %v891
      %v950 = vpop.f32.mrf.mxu0
      %v951 = vadd.f32 0.0, %v950
      %v952 = vpop.f32.mrf.mxu0
      %v953 = vadd.f32 0.0, %v952
      %954 = vmatmul.bf16.gmra.mxu0 %v892
      %v955 = vpop.f32.mrf.mxu0
      %v956 = vadd.f32 0.0, %v955
      %v957 = vpop.f32.mrf.mxu0
      %v958 = vadd.f32 0.0, %v957
      %959 = vmatmul.bf16.gmra.mxu0 %v893
      %v960 = vpop.f32.mrf.mxu0
      %v961 = vadd.f32 0.0, %v960
      %v962 = vpop.f32.mrf.mxu0
      %v963 = vadd.f32 0.0, %v962
      %964 = vmatmul.bf16.gmra.mxu0 %v894
      %v965 = vpop.f32.mrf.mxu0
      %v966 = vadd.f32 0.0, %v965
      %v967 = vpop.f32.mrf.mxu0
      %v968 = vadd.f32 0.0, %v967
      %969 = vmatmul.bf16.gmra.mxu0 %v895
      %v970 = vpop.f32.mrf.mxu0
      %v971 = vadd.f32 0.0, %v970
      %v972 = vpop.f32.mrf.mxu0
      %v973 = vadd.f32 0.0, %v972
      %974 = vmatmul.bf16.gmra.mxu0 %v896
      %v975 = vpop.f32.mrf.mxu0
      %v976 = vadd.f32 0.0, %v975
      %v977 = vpop.f32.mrf.mxu0
      %v978 = vadd.f32 0.0, %v977
      %979 = vmatmul.bf16.gmra.mxu0 %v897
      %v980 = vpop.f32.mrf.mxu0
      %v981 = vadd.f32 0.0, %v980
      %v982 = vpop.f32.mrf.mxu0
      %983 = vdwg.mxu0
      %v984 = vmax.f32 %v784, %v921
      %v985 = vmax.f32 %v785, %v923
      %v986 = vmax.f32 %v786, %v926
      %v987 = vmax.f32 %v787, %v928
      %v988 = vmax.f32 %v788, %v931
      %v989 = vmax.f32 %v789, %v933
      %v990 = vmax.f32 %v790, %v936
      %v991 = vmax.f32 %v791, %v938
      %v992 = vmax.f32 %v792, %v941
      %v993 = vmax.f32 %v793, %v943
      %v994 = vmax.f32 %v794, %v946
      %v995 = vmax.f32 %v795, %v948
      %v996 = vmax.f32 %v796, %v951
      %v997 = vmax.f32 %v797, %v953
      %v998 = vmax.f32 %v798, %v956
      %v999 = vmax.f32 %v799, %v958
      %v1000 = vmax.f32 %v800, %v961
      %v1001 = vmax.f32 %v801, %v963
      %v1002 = vmax.f32 %v802, %v966
      %v1003 = vmax.f32 %v803, %v968
      %v1004 = vmax.f32 %v804, %v971
      %v1005 = vmax.f32 %v805, %v973
      %v1006 = vmax.f32 %v806, %v976
      %v1007 = vmax.f32 %v807, %v978
      %v1008 = vmax.f32 %v808, %v981
      %v1009 = vld [vmem:[%s2] sm:$0x1]
      %v1011 = vperm.slane %v1009, 0
      %v1013 = vadd.f32 %v984, %v1011
      %v1014 = vadd.f32 %v985, %v1011
      %v1015 = vadd.f32 %v986, %v1011
      %v1016 = vadd.f32 %v987, %v1011
      %v1017 = vadd.f32 %v988, %v1011
      %v1018 = vadd.f32 %v989, %v1011
      %v1019 = vadd.f32 %v990, %v1011
      %v1020 = vadd.f32 %v991, %v1011
      %v1021 = vadd.f32 %v992, %v1011
      %v1022 = vadd.f32 %v993, %v1011
      %v1023 = vadd.f32 %v994, %v1011
      %v1024 = vadd.f32 %v995, %v1011
      %v1025 = vadd.f32 %v996, %v1011
      %v1026 = vadd.f32 %v997, %v1011
      %v1027 = vadd.f32 %v998, %v1011
      %v1028 = vadd.f32 %v999, %v1011
      %v1029 = vadd.f32 %v1000, %v1011
      %v1030 = vadd.f32 %v1001, %v1011
      %v1031 = vadd.f32 %v1002, %v1011
      %v1032 = vadd.f32 %v1003, %v1011
      %v1033 = vadd.f32 %v1004, %v1011
      %v1034 = vadd.f32 %v1005, %v1011
      %v1035 = vadd.f32 %v1006, %v1011
      %v1036 = vadd.f32 %v1007, %v1011
      %v1037 = vadd.f32 %v1008, %v1011
      %v1038 = vmax.f32 %v1013, 0.0
      %v1039 = vmax.f32 %v1014, 0.0
      %v1040 = vmax.f32 %v1015, 0.0
      %v1041 = vmax.f32 %v1016, 0.0
      %v1042 = vmax.f32 %v1017, 0.0
      %v1043 = vmax.f32 %v1018, 0.0
      %v1044 = vmax.f32 %v1019, 0.0
      %v1045 = vmax.f32 %v1020, 0.0
      %v1046 = vmax.f32 %v1021, 0.0
      %v1047 = vmax.f32 %v1022, 0.0
      %v1048 = vmax.f32 %v1023, 0.0
      %v1049 = vmax.f32 %v1024, 0.0
      %v1050 = vmax.f32 %v1025, 0.0
      %v1051 = vmax.f32 %v1026, 0.0
      %v1052 = vmax.f32 %v1027, 0.0
      %v1053 = vmax.f32 %v1028, 0.0
      %v1054 = vmax.f32 %v1029, 0.0
      %v1055 = vmax.f32 %v1030, 0.0
      %v1056 = vmax.f32 %v1031, 0.0
      %v1057 = vmax.f32 %v1032, 0.0
      %v1058 = vmax.f32 %v1033, 0.0
      %v1059 = vmax.f32 %v1034, 0.0
      %v1060 = vmax.f32 %v1035, 0.0
      %v1061 = vmax.f32 %v1036, 0.0
      %v1062 = vmax.f32 %v1037, 0.0
      %v1063 = vpack.c.bf16 %v1038, %v1038
      %v1064 = vpack.c.bf16 %v1039, %v1039
      %v1065 = vpack.c.bf16 %v1040, %v1040
      %v1066 = vpack.c.bf16 %v1041, %v1041
      %v1067 = vpack.c.bf16 %v1042, %v1042
      %v1068 = vpack.c.bf16 %v1043, %v1043
      %v1069 = vpack.c.bf16 %v1044, %v1044
      %v1070 = vpack.c.bf16 %v1045, %v1045
      %v1071 = vpack.c.bf16 %v1046, %v1046
      %v1072 = vpack.c.bf16 %v1047, %v1047
      %v1073 = vpack.c.bf16 %v1048, %v1048
      %v1074 = vpack.c.bf16 %v1049, %v1049
      %v1075 = vpack.c.bf16 %v1050, %v1050
      %v1076 = vpack.c.bf16 %v1051, %v1051
      %v1077 = vpack.c.bf16 %v1052, %v1052
      %v1078 = vpack.c.bf16 %v1053, %v1053
      %v1079 = vpack.c.bf16 %v1054, %v1054
      %v1080 = vpack.c.bf16 %v1055, %v1055
      %v1081 = vpack.c.bf16 %v1056, %v1056
      %v1082 = vpack.c.bf16 %v1057, %v1057
      %v1083 = vpack.c.bf16 %v1058, %v1058
      %v1084 = vpack.c.bf16 %v1059, %v1059
      %v1085 = vpack.c.bf16 %v1060, %v1060
      %v1086 = vpack.c.bf16 %v1061, %v1061
      %v1087 = vpack.c.bf16 %v1062, %v1062
      %1088 = vst [vmem:[%s170] sm:$0xf] %v1063
      %1089 = vst [vmem:[%s170 + $0x4] sm:$0xf] %v1064
      %1090 = vst [vmem:[%s170 + $0x8] sm:$0xf] %v1065
      %1091 = vst [vmem:[%s170 + $0xc] sm:$0xf] %v1066
      %1092 = vst [vmem:[%s170 + $0x10] sm:$0xf] %v1067
      %1093 = vst [vmem:[%s170 + $0x14] sm:$0xf] %v1068
      %1094 = vst [vmem:[%s170 + $0x18] sm:$0xf] %v1069
      %1095 = vst [vmem:[%s170 + $0x1c] sm:$0xf] %v1070
      %1096 = vst [vmem:[%s170 + $0x20] sm:$0xf] %v1071
      %1097 = vst [vmem:[%s170 + $0x24] sm:$0xf] %v1072
      %1098 = vst [vmem:[%s170 + $0x28] sm:$0xf] %v1073
      %1099 = vst [vmem:[%s170 + $0x2c] sm:$0xf] %v1074
      %1100 = vst [vmem:[%s170 + $0x30] sm:$0xf] %v1075
      %1101 = vst [vmem:[%s170 + $0x34] sm:$0xf] %v1076
      %1102 = vst [vmem:[%s170 + $0x38] sm:$0xf] %v1077
      %1103 = vst [vmem:[%s170 + $0x3c] sm:$0xf] %v1078
      %1104 = vst [vmem:[%s170 + $0x40] sm:$0xf] %v1079
      %1105 = vst [vmem:[%s170 + $0x44] sm:$0xf] %v1080
      %1106 = vst [vmem:[%s170 + $0x48] sm:$0xf] %v1081
      %1107 = vst [vmem:[%s170 + $0x4c] sm:$0xf] %v1082
      %1108 = vst [vmem:[%s170 + $0x50] sm:$0xf] %v1083
      %1109 = vst [vmem:[%s170 + $0x54] sm:$0xf] %v1084
      %1110 = vst [vmem:[%s170 + $0x58] sm:$0xf] %v1085
      %1111 = vst [vmem:[%s170 + $0x5c] sm:$0xf] %v1086
      %1112 = vst [vmem:[%s170 + $0x60] sm:$0x3] %v1087
      %p1113 = scmp.lt.s32.totalorder %s14, 1
      %s1114 = scalar_select %p1113, %s14, 1
      %s1115 = smul.addr %s1114, 25
      %s1116 = smul.addr %s1115, 4
      %s1117 = scalar_lea.vmem %s3, %s1116
      // Predicated region
      $region33: #{cnn_forward.3} parent=31 // pred_check
        %p1118 = pneg %p100
      $region34: #{cnn_forward.3} parent=31 // pred_check_branch
        %1120 = sbr.rel (%p1118) target = $region36
      $region35: #{cnn_forward.3} parent=31 // pred_region
        _
      $region36: #{cnn_forward.3} parent=31 // pred_fallthru
        _
    $region32: #{cnn_forward.3} parent=5 // pred_fallthru
      _
    %p1121 = scmp.le.s32.totalorder 2, %s9
    // Predicated region
    $region37: #{cnn_forward.3} parent=5 // pred_check
      %p1122 = pneg %p1121
    $region38: #{cnn_forward.3} parent=5 // pred_check_branch
      %1124 = sbr.rel (%p1122) target = $region40
    $region39: #{cnn_forward.3} parent=5 // pred_region
      %s1125 = ssub.s32 %s9, 2
      // Predicated region
      $region41: #{cnn_forward.3} parent=39 // pred_check
        %p1126 = pneg %p106
      $region42: #{cnn_forward.3} parent=39 // pred_check_branch
        %1128 = sbr.rel (%p1126) target = $region44
      $region43: #{cnn_forward.3} parent=39 // pred_region
        %p1129 = scmp.lt.s32.totalorder %s15, 1
        %s1130 = scalar_select %p1129, %s15, 1
        %s1131 = smul.addr %s1130, 25
        %s1132 = smul.addr %s1131, 4
        %s1133 = scalar_lea.vmem %s3, %s1132
      $region44: #{cnn_forward.3} parent=39 // pred_fallthru
        _
    $region40: #{cnn_forward.3} parent=5 // pred_fallthru
      _
  $region6: #{cnn_forward.3} parent=0 // loop_footer
    %s13 = sadd.s32 1, %s9
  $region7: #{cnn_forward.3} parent=0 // loop_footer_branch
    %8 = sbr.rel target = $region3
  $region8: #{cnn_forward.3} parent=0 // loop_exit
    _

// kernel: cnn_forward.5
$region0: #{cnn_forward.5}
  #allocation0 [shape = 'u32[]', space=smem, size = 0x4, offset = 0x4, fixed_abs, tag = 'smem constant byte address 0x4 - core index']
  #allocation1 [shape = 'u32[72,128]{1,0:T(1,128)}', space=vmem, size = 0x9000, scoped, tag = 'internal scratch']
  %s0 = inlined_call_operand.vmem [shape: bf16[2,512], index: 0, kind: input, shape index: {}]
  %s1 = inlined_call_operand.vmem [shape: bf16[512,128], index: 1, kind: input, shape index: {}]
  %s2 = inlined_call_operand.vmem [shape: f32[1,128], index: 2, kind: input, shape index: {}]
  %s3 = inlined_call_operand.vmem [shape: bf16[128,128], index: 3, kind: input, shape index: {}]
  %s4 = inlined_call_operand.vmem [shape: f32[1,128], index: 4, kind: input, shape index: {}]
  %s5 = inlined_call_operand.vmem [shape: bf16[128,128], index: 5, kind: input, shape index: {}]
  %s6 = inlined_call_operand.vmem [shape: f32[1,128], index: 6, kind: input, shape index: {}]
  %s7 = inlined_call_operand.hbm [shape: f32[2,128], index: 7, kind: output, shape index: {}]
  %s8 = sld [smem:[#allocation0]]
  $region38: #{cnn_forward.5} parent=0
    _
  %s10 = ssub.s32 1, %s8
  %s11 = scalar_select 0, %s10, %s8
  $region1: #{cnn_forward.5} parent=0
    #allocation2 [shape = 'u8[1024]{0}', space=vmem, size = 0x400, scoped, tag = 'output window, operand 0, single buffered']
    #allocation3 [shape = 's32[1]{0}', space=sflag, size = 0x4, scoped, tag = 'scoped memory for cnn_forward.5']
    %12 = vsyncpa [#allocation3], 0
    // Predicated region
    $region2: #{cnn_forward.5} parent=1 // pred_check
      _
    $region3: #{cnn_forward.5} parent=1 // pred_check_branch
      %14 = sbr.rel (0) target = $region5
    $region4: #{cnn_forward.5} parent=1 // pred_region
      _
    $region5: #{cnn_forward.5} parent=1 // pred_fallthru
      _
    // Predicated region
    $region6: #{cnn_forward.5} parent=1 // pred_check
      _
    $region7: #{cnn_forward.5} parent=1 // pred_check_branch
      %16 = sbr.rel (0) target = $region9
    $region8: #{cnn_forward.5} parent=1 // pred_region
      _
    $region9: #{cnn_forward.5} parent=1 // pred_fallthru
      _
    // Predicated region
    $region10: #{cnn_forward.5} parent=1 // pred_check
      _
    $region11: #{cnn_forward.5} parent=1 // pred_check_branch
      %18 = sbr.rel (0) target = $region13
    $region12: #{cnn_forward.5} parent=1 // pred_region
      _
    $region13: #{cnn_forward.5} parent=1 // pred_fallthru
      _
    // Predicated region
    $region14: #{cnn_forward.5} parent=1 // pred_check
      _
    $region15: #{cnn_forward.5} parent=1 // pred_check_branch
      %20 = sbr.rel (0) target = $region17
    $region16: #{cnn_forward.5} parent=1 // pred_region
      _
    $region17: #{cnn_forward.5} parent=1 // pred_fallthru
      _
    // Predicated region
    $region18: #{cnn_forward.5} parent=1 // pred_check
      _
    $region19: #{cnn_forward.5} parent=1 // pred_check_branch
      %22 = sbr.rel (0) target = $region21
    $region20: #{cnn_forward.5} parent=1 // pred_region
      _
    $region21: #{cnn_forward.5} parent=1 // pred_fallthru
      _
    // Predicated region
    $region22: #{cnn_forward.5} parent=1 // pred_check
      _
    $region23: #{cnn_forward.5} parent=1 // pred_check_branch
      %24 = sbr.rel (0) target = $region25
    $region24: #{cnn_forward.5} parent=1 // pred_region
      _
    $region25: #{cnn_forward.5} parent=1 // pred_fallthru
      _
    // Predicated region
    $region26: #{cnn_forward.5} parent=1 // pred_check
      _
    $region27: #{cnn_forward.5} parent=1 // pred_check_branch
      %26 = sbr.rel (0) target = $region29
    $region28: #{cnn_forward.5} parent=1 // pred_region
      _
    $region29: #{cnn_forward.5} parent=1 // pred_fallthru
      _
    %v27 = vld [vmem:[%s0] sm:$0xf]
    %v28 = vld [vmem:[%s1] sm:$0xf]
    %v29 = vld [vmem:[%s1 + $0x4] sm:$0xf]
    %v30 = vld [vmem:[%s1 + $0x8] sm:$0xf]
    %v31 = vld [vmem:[%s1 + $0xc] sm:$0xf]
    %v32 = vld [vmem:[%s1 + $0x10] sm:$0xf]
    %v33 = vld [vmem:[%s1 + $0x14] sm:$0xf]
    %v34 = vld [vmem:[%s1 + $0x18] sm:$0xf]
    %v35 = vld [vmem:[%s1 + $0x1c] sm:$0xf]
    %v36 = vld [vmem:[%s1 + $0x20] sm:$0xf]
    %v37 = vld [vmem:[%s1 + $0x24] sm:$0xf]
    %v38 = vld [vmem:[%s1 + $0x28] sm:$0xf]
    %v39 = vld [vmem:[%s1 + $0x2c] sm:$0xf]
    %v40 = vld [vmem:[%s1 + $0x30] sm:$0xf]
    %v41 = vld [vmem:[%s1 + $0x34] sm:$0xf]
    %v42 = vld [vmem:[%s1 + $0x38] sm:$0xf]
    %v43 = vld [vmem:[%s1 + $0x3c] sm:$0xf]
    %v44 = vld [vmem:[%s1 + $0x40] sm:$0xf]
    %v45 = vld [vmem:[%s1 + $0x44] sm:$0xf]
    %v46 = vld [vmem:[%s1 + $0x48] sm:$0xf]
    %v47 = vld [vmem:[%s1 + $0x4c] sm:$0xf]
    %v48 = vld [vmem:[%s1 + $0x50] sm:$0xf]
    %v49 = vld [vmem:[%s1 + $0x54] sm:$0xf]
    %v50 = vld [vmem:[%s1 + $0x58] sm:$0xf]
    %v51 = vld [vmem:[%s1 + $0x5c] sm:$0xf]
    %v52 = vld [vmem:[%s1 + $0x60] sm:$0xf]
    %v53 = vld [vmem:[%s1 + $0x64] sm:$0xf]
    %v54 = vld [vmem:[%s1 + $0x68] sm:$0xf]
    %v55 = vld [vmem:[%s1 + $0x6c] sm:$0xf]
    %v56 = vld [vmem:[%s1 + $0x70] sm:$0xf]
    %v57 = vld [vmem:[%s1 + $0x74] sm:$0xf]
    %v58 = vld [vmem:[%s1 + $0x78] sm:$0xf]
    %v59 = vld [vmem:[%s1 + $0x7c] sm:$0xf]
    %v60 = vld [vmem:[%s1 + $0x80] sm:$0xf]
    %v61 = vld [vmem:[%s1 + $0x84] sm:$0xf]
    %v62 = vld [vmem:[%s1 + $0x88] sm:$0xf]
    %v63 = vld [vmem:[%s1 + $0x8c] sm:$0xf]
    %v64 = vld [vmem:[%s1 + $0x90] sm:$0xf]
    %v65 = vld [vmem:[%s1 + $0x94] sm:$0xf]
    %v66 = vld [vmem:[%s1 + $0x98] sm:$0xf]
    %v67 = vld [vmem:[%s1 + $0x9c] sm:$0xf]
    %v68 = vld [vmem:[%s1 + $0xa0] sm:$0xf]
    %v69 = vld [vmem:[%s1 + $0xa4] sm:$0xf]
    %v70 = vld [vmem:[%s1 + $0xa8] sm:$0xf]
    %v71 = vld [vmem:[%s1 + $0xac] sm:$0xf]
    %v72 = vld [vmem:[%s1 + $0xb0] sm:$0xf]
    %v73 = vld [vmem:[%s1 + $0xb4] sm:$0xf]
    %v74 = vld [vmem:[%s1 + $0xb8] sm:$0xf]
    %v75 = vld [vmem:[%s1 + $0xbc] sm:$0xf]
    %v76 = vld [vmem:[%s1 + $0xc0] sm:$0xf]
    %v77 = vld [vmem:[%s1 + $0xc4] sm:$0xf]
    %v78 = vld [vmem:[%s1 + $0xc8] sm:$0xf]
    %v79 = vld [vmem:[%s1 + $0xcc] sm:$0xf]
    %v80 = vld [vmem:[%s1 + $0xd0] sm:$0xf]
    %v81 = vld [vmem:[%s1 + $0xd4] sm:$0xf]
    %v82 = vld [vmem:[%s1 + $0xd8] sm:$0xf]
    %v83 = vld [vmem:[%s1 + $0xdc] sm:$0xf]
    %v84 = vld [vmem:[%s1 + $0xe0] sm:$0xf]
    %v85 = vld [vmem:[%s1 + $0xe4] sm:$0xf]
    %v86 = vld [vmem:[%s1 + $0xe8] sm:$0xf]
    %v87 = vld [vmem:[%s1 + $0xec] sm:$0xf]
    %v88 = vld [vmem:[%s1 + $0xf0] sm:$0xf]
    %v89 = vld [vmem:[%s1 + $0xf4] sm:$0xf]
    %v90 = vld [vmem:[%s1 + $0xf8] sm:$0xf]
    %v91 = vld [vmem:[%s1 + $0xfc] sm:$0xf]
    %v92 = vld [vmem:[%s2] sm:$0x1]
    %v94 = vperm.slane %v92, 0
    %97 = vst [vmem:[#allocation1] ss:$9 sm:$0xff] %v27
    %v98 = vld [vmem:[#allocation1] sm:$0xff]
    %v99 = vld [vmem:[#allocation1 + $0x9] sm:$0xff]
    %v100 = vld [vmem:[#allocation1 + $0x12] sm:$0xff]
    %v101 = vld [vmem:[#allocation1 + $0x1b] sm:$0xff]
    %v170 = vunpack.c.l.b16 %v28
    %v171 = vunpack.c.l.b16 %v29
    %v172 = vunpack.c.l.b16 %v30
    %v173 = vunpack.c.l.b16 %v31
    %v174 = vunpack.c.l.b16 %v32
    %v175 = vunpack.c.l.b16 %v33
    %v176 = vunpack.c.l.b16 %v34
    %v177 = vunpack.c.l.b16 %v35
    %v178 = vunpack.c.l.b16 %v36
    %v179 = vunpack.c.l.b16 %v37
    %v180 = vunpack.c.l.b16 %v38
    %v181 = vunpack.c.l.b16 %v39
    %v182 = vunpack.c.l.b16 %v40
    %v183 = vunpack.c.l.b16 %v41
    %v184 = vunpack.c.l.b16 %v42
    %v185 = vunpack.c.l.b16 %v43
    %v186 = vunpack.c.l.b16 %v44
    %v187 = vunpack.c.l.b16 %v45
    %v188 = vunpack.c.l.b16 %v46
    %v189 = vunpack.c.l.b16 %v47
    %v190 = vunpack.c.l.b16 %v48
    %v191 = vunpack.c.l.b16 %v49
    %v192 = vunpack.c.l.b16 %v50
    %v193 = vunpack.c.l.b16 %v51
    %v194 = vunpack.c.l.b16 %v52
    %v195 = vunpack.c.l.b16 %v53
    %v196 = vunpack.c.l.b16 %v54
    %v197 = vunpack.c.l.b16 %v55
    %v198 = vunpack.c.l.b16 %v56
    %v199 = vunpack.c.l.b16 %v57
    %v200 = vunpack.c.l.b16 %v58
    %v201 = vunpack.c.l.b16 %v59
    %v202 = vunpack.c.l.b16 %v60
    %v203 = vunpack.c.l.b16 %v61
    %v204 = vunpack.c.l.b16 %v62
    %v205 = vunpack.c.l.b16 %v63
    %v206 = vunpack.c.l.b16 %v64
    %v207 = vunpack.c.l.b16 %v65
    %v208 = vunpack.c.l.b16 %v66
    %v209 = vunpack.c.l.b16 %v67
    %v210 = vunpack.c.l.b16 %v68
    %v211 = vunpack.c.l.b16 %v69
    %v212 = vunpack.c.l.b16 %v70
    %v213 = vunpack.c.l.b16 %v71
    %v214 = vunpack.c.l.b16 %v72
    %v215 = vunpack.c.l.b16 %v73
    %v216 = vunpack.c.l.b16 %v74
    %v217 = vunpack.c.l.b16 %v75
    %v218 = vunpack.c.l.b16 %v76
    %v219 = vunpack.c.l.b16 %v77
    %v220 = vunpack.c.l.b16 %v78
    %v221 = vunpack.c.l.b16 %v79
    %v222 = vunpack.c.l.b16 %v80
    %v223 = vunpack.c.l.b16 %v81
    %v224 = vunpack.c.l.b16 %v82
    %v225 = vunpack.c.l.b16 %v83
    %v226 = vunpack.c.l.b16 %v84
    %v227 = vunpack.c.l.b16 %v85
    %v228 = vunpack.c.l.b16 %v86
    %v229 = vunpack.c.l.b16 %v87
    %v230 = vunpack.c.l.b16 %v88
    %v231 = vunpack.c.l.b16 %v89
    %v232 = vunpack.c.l.b16 %v90
    %v233 = vunpack.c.l.b16 %v91
    %v234 = vpack.c.b16 %v171, %v170
    %v235 = vpack.c.b16 %v173, %v172
    %v236 = vpack.c.b16 %v175, %v174
    %v237 = vpack.c.b16 %v177, %v176
    %v238 = vpack.c.b16 %v179, %v178
    %v239 = vpack.c.b16 %v181, %v180
    %v240 = vpack.c.b16 %v183, %v182
    %v241 = vpack.c.b16 %v185, %v184
    %v242 = vpack.c.b16 %v187, %v186
    %v243 = vpack.c.b16 %v189, %v188
    %v244 = vpack.c.b16 %v191, %v190
    %v245 = vpack.c.b16 %v193, %v192
    %v246 = vpack.c.b16 %v195, %v194
    %v247 = vpack.c.b16 %v197, %v196
    %v248 = vpack.c.b16 %v199, %v198
    %v249 = vpack.c.b16 %v201, %v200
    %v250 = vpack.c.b16 %v203, %v202
    %v251 = vpack.c.b16 %v205, %v204
    %v252 = vpack.c.b16 %v207, %v206
    %v253 = vpack.c.b16 %v209, %v208
    %v254 = vpack.c.b16 %v211, %v210
    %v255 = vpack.c.b16 %v213, %v212
    %v256 = vpack.c.b16 %v215, %v214
    %v257 = vpack.c.b16 %v217, %v216
    %v258 = vpack.c.b16 %v219, %v218
    %v259 = vpack.c.b16 %v221, %v220
    %v260 = vpack.c.b16 %v223, %v222
    %v261 = vpack.c.b16 %v225, %v224
    %v262 = vpack.c.b16 %v227, %v226
    %v263 = vpack.c.b16 %v229, %v228
    %v264 = vpack.c.b16 %v231, %v230
    %v265 = vpack.c.b16 %v233, %v232
    %298 = vmatpush.bf16.msra.mxu0 %v241
    %299 = vmatpush.bf16.msra.mxu0 %v240
    %300 = vmatpush.bf16.msra.mxu0 %v239
    %301 = vmatpush.bf16.msra.mxu0 %v238
    %302 = vmatpush.bf16.msra.mxu0 %v237
    %303 = vmatpush.bf16.msra.mxu0 %v236
    %304 = vmatpush.bf16.msra.mxu0 %v235
    %305 = vmatpush.bf16.msra.mxu0 %v234
    %306 = vmatmul.bf16.gmra.mxu0 %v98
    %v307 = vpop.f32.mrf.mxu0
    %v308 = vadd.f32 %v94, %v307
    %v309 = vpop.f32.mrf.mxu0
    %310 = vdwg.mxu0
    %311 = vmatpush.bf16.msra.mxu0 %v249
    %312 = vmatpush.bf16.msra.mxu0 %v248
    %313 = vmatpush.bf16.msra.mxu0 %v247
    %314 = vmatpush.bf16.msra.mxu0 %v246
    %315 = vmatpush.bf16.msra.mxu0 %v245
    %316 = vmatpush.bf16.msra.mxu0 %v244
    %317 = vmatpush.bf16.msra.mxu0 %v243
    %318 = vmatpush.bf16.msra.mxu0 %v242
    %319 = vmatmul.bf16.gmra.mxu0 %v99
    %v320 = vpop.f32.mrf.mxu0
    %v321 = vadd.f32 %v308, %v320
    %v322 = vpop.f32.mrf.mxu0
    %323 = vdwg.mxu0
    %324 = vmatpush.bf16.msra.mxu0 %v257
    %325 = vmatpush.bf16.msra.mxu0 %v256
    %326 = vmatpush.bf16.msra.mxu0 %v255
    %327 = vmatpush.bf16.msra.mxu0 %v254
    %328 = vmatpush.bf16.msra.mxu0 %v253
    %329 = vmatpush.bf16.msra.mxu0 %v252
    %330 = vmatpush.bf16.msra.mxu0 %v251
    %331 = vmatpush.bf16.msra.mxu0 %v250
    %332 = vmatmul.bf16.gmra.mxu0 %v100
    %v333 = vpop.f32.mrf.mxu0
    %v334 = vadd.f32 %v321, %v333
    %v335 = vpop.f32.mrf.mxu0
    %336 = vdwg.mxu0
    %337 = vmatpush.bf16.msra.mxu0 %v265
    %338 = vmatpush.bf16.msra.mxu0 %v264
    %339 = vmatpush.bf16.msra.mxu0 %v263
    %340 = vmatpush.bf16.msra.mxu0 %v262
    %341 = vmatpush.bf16.msra.mxu0 %v261
    %342 = vmatpush.bf16.msra.mxu0 %v260
    %343 = vmatpush.bf16.msra.mxu0 %v259
    %344 = vmatpush.bf16.msra.mxu0 %v258
    %345 = vmatmul.bf16.gmra.mxu0 %v101
    %v346 = vpop.f32.mrf.mxu0
    %v347 = vadd.f32 %v334, %v346
    %v348 = vpop.f32.mrf.mxu0
    %349 = vdwg.mxu0
    %v350 = vmax.f32 %v347, 0.0
    %v351 = vpack.c.bf16 %v350, %v350
    %v352 = vld [vmem:[%s3] sm:$0xf]
    %v353 = vld [vmem:[%s3 + $0x4] sm:$0xf]
    %v354 = vld [vmem:[%s3 + $0x8] sm:$0xf]
    %v355 = vld [vmem:[%s3 + $0xc] sm:$0xf]
    %v356 = vld [vmem:[%s3 + $0x10] sm:$0xf]
    %v357 = vld [vmem:[%s3 + $0x14] sm:$0xf]
    %v358 = vld [vmem:[%s3 + $0x18] sm:$0xf]
    %v359 = vld [vmem:[%s3 + $0x1c] sm:$0xf]
    %v360 = vld [vmem:[%s3 + $0x20] sm:$0xf]
    %v361 = vld [vmem:[%s3 + $0x24] sm:$0xf]
    %v362 = vld [vmem:[%s3 + $0x28] sm:$0xf]
    %v363 = vld [vmem:[%s3 + $0x2c] sm:$0xf]
    %v364 = vld [vmem:[%s3 + $0x30] sm:$0xf]
    %v365 = vld [vmem:[%s3 + $0x34] sm:$0xf]
    %v366 = vld [vmem:[%s3 + $0x38] sm:$0xf]
    %v367 = vld [vmem:[%s3 + $0x3c] sm:$0xf]
    %v368 = vld [vmem:[%s4] sm:$0x1]
    %v370 = vperm.slane %v368, 0
    %v388 = vunpack.c.l.b16 %v352
    %v389 = vunpack.c.l.b16 %v353
    %v390 = vunpack.c.l.b16 %v354
    %v391 = vunpack.c.l.b16 %v355
    %v392 = vunpack.c.l.b16 %v356
    %v393 = vunpack.c.l.b16 %v357
    %v394 = vunpack.c.l.b16 %v358
    %v395 = vunpack.c.l.b16 %v359
    %v396 = vunpack.c.l.b16 %v360
    %v397 = vunpack.c.l.b16 %v361
    %v398 = vunpack.c.l.b16 %v362
    %v399 = vunpack.c.l.b16 %v363
    %v400 = vunpack.c.l.b16 %v364
    %v401 = vunpack.c.l.b16 %v365
    %v402 = vunpack.c.l.b16 %v366
    %v403 = vunpack.c.l.b16 %v367
    %v404 = vpack.c.b16 %v389, %v388
    %v405 = vpack.c.b16 %v391, %v390
    %v406 = vpack.c.b16 %v393, %v392
    %v407 = vpack.c.b16 %v395, %v394
    %v408 = vpack.c.b16 %v397, %v396
    %v409 = vpack.c.b16 %v399, %v398
    %v410 = vpack.c.b16 %v401, %v400
    %v411 = vpack.c.b16 %v403, %v402
    %420 = vmatpush.bf16.msra.mxu0 %v411
    %421 = vmatpush.bf16.msra.mxu0 %v410
    %422 = vmatpush.bf16.msra.mxu0 %v409
    %423 = vmatpush.bf16.msra.mxu0 %v408
    %424 = vmatpush.bf16.msra.mxu0 %v407
    %425 = vmatpush.bf16.msra.mxu0 %v406
    %426 = vmatpush.bf16.msra.mxu0 %v405
    %427 = vmatpush.bf16.msra.mxu0 %v404
    %428 = vmatmul.bf16.gmra.mxu0 %v351
    %v429 = vpop.f32.mrf.mxu0
    %v430 = vadd.f32 %v370, %v429
    %v431 = vpop.f32.mrf.mxu0
    %432 = vdwg.mxu0
    %v433 = vmax.f32 %v430, 0.0
    %v434 = vpack.c.bf16 %v433, %v433
    %v435 = vld [vmem:[%s5] sm:$0xf]
    %v436 = vld [vmem:[%s5 + $0x4] sm:$0xf]
    %v437 = vld [vmem:[%s5 + $0x8] sm:$0xf]
    %v438 = vld [vmem:[%s5 + $0xc] sm:$0xf]
    %v439 = vld [vmem:[%s5 + $0x10] sm:$0xf]
    %v440 = vld [vmem:[%s5 + $0x14] sm:$0xf]
    %v441 = vld [vmem:[%s5 + $0x18] sm:$0xf]
    %v442 = vld [vmem:[%s5 + $0x1c] sm:$0xf]
    %v443 = vld [vmem:[%s5 + $0x20] sm:$0xf]
    %v444 = vld [vmem:[%s5 + $0x24] sm:$0xf]
    %v445 = vld [vmem:[%s5 + $0x28] sm:$0xf]
    %v446 = vld [vmem:[%s5 + $0x2c] sm:$0xf]
    %v447 = vld [vmem:[%s5 + $0x30] sm:$0xf]
    %v448 = vld [vmem:[%s5 + $0x34] sm:$0xf]
    %v449 = vld [vmem:[%s5 + $0x38] sm:$0xf]
    %v450 = vld [vmem:[%s5 + $0x3c] sm:$0xf]
    %v451 = vld [vmem:[%s6] sm:$0x1]
    %v453 = vperm.slane %v451, 0
    %v471 = vunpack.c.l.b16 %v435
    %v472 = vunpack.c.l.b16 %v436
    %v473 = vunpack.c.l.b16 %v437
    %v474 = vunpack.c.l.b16 %v438
    %v475 = vunpack.c.l.b16 %v439
    %v476 = vunpack.c.l.b16 %v440
    %v477 = vunpack.c.l.b16 %v441
    %v478 = vunpack.c.l.b16 %v442
    %v479 = vunpack.c.l.b16 %v443
    %v480 = vunpack.c.l.b16 %v444
    %v481 = vunpack.c.l.b16 %v445
    %v482 = vunpack.c.l.b16 %v446
    %v483 = vunpack.c.l.b16 %v447
    %v484 = vunpack.c.l.b16 %v448
    %v485 = vunpack.c.l.b16 %v449
    %v486 = vunpack.c.l.b16 %v450
    %v487 = vpack.c.b16 %v472, %v471
    %v488 = vpack.c.b16 %v474, %v473
    %v489 = vpack.c.b16 %v476, %v475
    %v490 = vpack.c.b16 %v478, %v477
    %v491 = vpack.c.b16 %v480, %v479
    %v492 = vpack.c.b16 %v482, %v481
    %v493 = vpack.c.b16 %v484, %v483
    %v494 = vpack.c.b16 %v486, %v485
    %503 = vmatpush.bf16.msra.mxu0 %v494
    %504 = vmatpush.bf16.msra.mxu0 %v493
    %505 = vmatpush.bf16.msra.mxu0 %v492
    %506 = vmatpush.bf16.msra.mxu0 %v491
    %507 = vmatpush.bf16.msra.mxu0 %v490
    %508 = vmatpush.bf16.msra.mxu0 %v489
    %509 = vmatpush.bf16.msra.mxu0 %v488
    %510 = vmatpush.bf16.msra.mxu0 %v487
    %511 = vmatmul.bf16.gmra.mxu0 %v434
    %v512 = vpop.f32.mrf.mxu0
    %v513 = vadd.f32 %v453, %v512
    %v514 = vpop.f32.mrf.mxu0
    %515 = vdwg.mxu0
    %v516 = vlaneseq
    %v517 = vand.u32 %v516, 127
    %vm518 = vcmp.lt.s32.totalorder %v517, 2
    %v519 = vsel %vm518, %v513, -inf
    %vm520 = vcmask 1041408
    %v521 = vsel %vm520, %v519, -inf
    %522 = vmax.xlane.f32.xlu0 %v521
    %v523 = vpop.xlane.xlu0 %522
    %v524 = vsub.f32 %v519, %v523
    %v525 = vmul.f32 %v524, 1.442695
    %v526 = vpow.pop %v525
    %v527 = vsel %vm520, %v526, 0.0
    %528 = vadd.xlane.f32.xlu0 %v527
    %v529 = vpop.xlane.xlu0 %528
    %v530 = vrcp.pop %v529
    %v531 = vmul.f32 %v529, %v530
    %v532 = vsub.f32 1.0, %v531
    %v533 = vmul.f32 %v530, %v532
    %v534 = vadd.f32 %v530, %v533
    %vm535 = vweird.f32 %v529
    %vm536 = vweird.f32 %v530
    %vm537 = vmor %vm535, %vm536
    %v538 = vsel %vm537, %v530, %v534
    %v539 = vand.u32 2147483647, %v529
    %vm540 = vcmp.eq.f32.partialorder %v539, 8.507059e+37
    %v541 = vand.u32 %v529, 2147483648
    %v542 = vor.u32 1.1754944e-38, %v541
    %v543 = vsel %vm540, %v542, %v538
    %v544 = vmul.f32 %v526, %v543
    %545 = vst [vmem:[#allocation2] sm:$0x3] %v544
    // Predicated region
    $region30: #{cnn_forward.5} parent=1 // pred_check
      _
    $region31: #{cnn_forward.5} parent=1 // pred_check_branch
      %547 = sbr.rel (0) target = $region33
    $region32: #{cnn_forward.5} parent=1 // pred_region
      %549 = vsyncadd [#allocation3], 0
      %s551 = sshll.u32 [#allocation2], 4
      %s552 = int_to_ptr.vmem [resolvable:$true] %s551
      %s553 = sshll.u32 %s7, 4
      %s554 = int_to_ptr.hbm [resolvable:$true] %s553
      %556 = dma.vmem_to_hbm [thread:$0]  %s552, 32, %s554, [#allocation3]
    $region33: #{cnn_forward.5} parent=1 // pred_fallthru
      _
    // Predicated region
    $region34: #{cnn_forward.5} parent=1 // pred_check
      _
    $region35: #{cnn_forward.5} parent=1 // pred_check_branch
      %558 = sbr.rel (0) target = $region37
    $region36: #{cnn_forward.5} parent=1 // pred_region
      %560 = dma.done [#allocation3], 32
    $region37: #{cnn_forward.5} parent=1 // pred_fallthru
      _
    %561 = vsyncpa [#allocation3], 1

// kernel: cnn_forward.4
$region0: #{cnn_forward.4}
  #allocation0 [shape = 'u32[]', space=smem, size = 0x4, offset = 0x4, fixed_abs, tag = 'smem constant byte address 0x4 - core index']
  #allocation1 [shape = 'u32[72,128]{1,0:T(1,128)}', space=vmem, size = 0x9000, scoped, tag = 'internal scratch']
  %s0 = inlined_call_operand.vmem [shape: bf16[2,4,25,256], index: 0, kind: input, shape index: {}]
  %s1 = inlined_call_operand.vmem [shape: bf16[256,128], index: 1, kind: input, shape index: {}]
  %s2 = inlined_call_operand.vmem [shape: f32[1,128], index: 2, kind: input, shape index: {}]
  %s3 = inlined_call_operand.vmem [shape: bf16[2,25,128], index: 3, kind: output, shape index: {}]
  %s4 = sld [smem:[#allocation0]]
  $region45: #{cnn_forward.4} parent=0
    _
  %s6 = ssub.s32 1, %s4
  %s7 = scalar_select 0, %s6, %s4
  loop: start=0, step=1, limit=4
  $region2: #{cnn_forward.4} parent=0 // loop_pre_header
    _
  $region3: #{cnn_forward.4} parent=0 // loop_header
    %s9 = sphi 0, %s13
    %p10 = scmp.ge.s32.totalorder %s9, 4
    %s19 = sphi 0, %s21
    %s22 = sphi 0, %s19
    %s23 = sphi 0, %s22
    %s39 = sphi 0, %s23
    %s43 = sphi 0, %s43
    %s45 = sphi 0, %s43
    %s46 = sphi 0, %s45
    %s60 = sphi 0, %s46
    %s64 = sphi 0, %s64
    %s66 = sphi 0, %s64
    %s67 = sphi 0, %s66
    %s81 = sphi 0, %s67
    %s87 = sphi 0, %s89
    %s90 = sphi 0, %s87
    %s91 = sphi 0, %s90
    %s107 = sphi 0, %s91
  $region4: #{cnn_forward.4} parent=0 // loop_header_branch
    %12 = sbr.rel (%p10) target = $region8
  $region5: #{cnn_forward.4} parent=0 // loop_body
    %s14 = ssub.s32 %s9, 1
    %s15 = ssub.s32 %s9, 2
    %s16 = sadd.s32 %s9, 1
    %s17 = ssub.s32 %s9, %s16
    %p18 = scmp.eq.s32.totalorder %s17, 0
    %s20 = sadd.s32 %s19, 1
    %s21 = scalar_select %p18, %s19, %s20
    %p24 = pneg %p18
    %p25 = scmp.eq.s32.totalorder %s9, 1
    %p26 = por %p24, %p25
    %p27 = scmp.ne.s32.totalorder %s19, %s22
    %p28 = scmp.eq.s32.totalorder %s9, 0
    %p29 = por %p27, %p28
    %p30 = scmp.ne.s32.totalorder %s19, %s22
    %p31 = scmp.eq.s32.totalorder %s14, 1
    %p32 = por %p30, %p31
    %p33 = scmp.ne.s32.totalorder %s22, %s23
    %p34 = scmp.eq.s32.totalorder %s14, 0
    %p35 = por %p33, %p34
    %p36 = scmp.ne.s32.totalorder %s22, %s23
    %p37 = scmp.eq.s32.totalorder %s15, 1
    %p38 = por %p36, %p37
    %p40 = scmp.ne.s32.totalorder %s23, %s39
    %p41 = scmp.eq.s32.totalorder %s15, 0
    %p42 = por %p40, %p41
    %s44 = sadd.s32 %s43, 1
    %p47 = scmp.eq.s32.totalorder %s9, 1
    %p48 = scmp.ne.s32.totalorder %s43, %s45
    %p49 = scmp.eq.s32.totalorder %s9, 0
    %p50 = por %p48, %p49
    %p51 = scmp.ne.s32.totalorder %s43, %s45
    %p52 = scmp.eq.s32.totalorder %s14, 1
    %p53 = por %p51, %p52
    %p54 = scmp.ne.s32.totalorder %s45, %s46
    %p55 = scmp.eq.s32.totalorder %s14, 0
    %p56 = por %p54, %p55
    %p57 = scmp.ne.s32.totalorder %s45, %s46
    %p58 = scmp.eq.s32.totalorder %s15, 1
    %p59 = por %p57, %p58
    %p61 = scmp.ne.s32.totalorder %s46, %s60
    %p62 = scmp.eq.s32.totalorder %s15, 0
    %p63 = por %p61, %p62
    %s65 = sadd.s32 %s64, 1
    %p68 = scmp.eq.s32.totalorder %s9, 1
    %p69 = scmp.ne.s32.totalorder %s64, %s66
    %p70 = scmp.eq.s32.totalorder %s9, 0
    %p71 = por %p69, %p70
    %p72 = scmp.ne.s32.totalorder %s64, %s66
    %p73 = scmp.eq.s32.totalorder %s14, 1
    %p74 = por %p72, %p73
    %p75 = scmp.ne.s32.totalorder %s66, %s67
    %p76 = scmp.eq.s32.totalorder %s14, 0
    %p77 = por %p75, %p76
    %p78 = scmp.ne.s32.totalorder %s66, %s67
    %p79 = scmp.eq.s32.totalorder %s15, 1
    %p80 = por %p78, %p79
    %p82 = scmp.ne.s32.totalorder %s67, %s81
    %p83 = scmp.eq.s32.totalorder %s15, 0
    %p84 = por %p82, %p83
    %s85 = ssub.s32 %s9, %s16
    %p86 = scmp.eq.s32.totalorder %s85, 0
    %s88 = sadd.s32 %s87, 1
    %s89 = scalar_select %p86, %s87, %s88
    %p92 = pneg %p86
    %p93 = scmp.eq.s32.totalorder %s9, 1
    %p94 = por %p92, %p93
    %p95 = scmp.ne.s32.totalorder %s87, %s90
    %p96 = scmp.eq.s32.totalorder %s9, 0
    %p97 = por %p95, %p96
    %p98 = scmp.ne.s32.totalorder %s87, %s90
    %p99 = scmp.eq.s32.totalorder %s14, 1
    %p100 = por %p98, %p99
    %p101 = scmp.ne.s32.totalorder %s90, %s91
    %p102 = scmp.eq.s32.totalorder %s14, 0
    %p103 = por %p101, %p102
    %p104 = scmp.ne.s32.totalorder %s90, %s91
    %p105 = scmp.eq.s32.totalorder %s15, 1
    %p106 = por %p104, %p105
    %p108 = scmp.ne.s32.totalorder %s91, %s107
    %p109 = scmp.eq.s32.totalorder %s15, 0
    %p110 = por %p108, %p109
    %p111 = scmp.le.s32.totalorder 1, %s9
    %p112 = scmp.lt.s32.totalorder %s9, 3
    %p113 = pnand %p111, %p112
    %p114 = pneg %p113
    // Predicated region
    $region9: #{cnn_forward.4} parent=5 // pred_check
      _
    $region10: #{cnn_forward.4} parent=5 // pred_check_branch
      %116 = sbr.rel (%p113) target = $region12
    $region11: #{cnn_forward.4} parent=5 // pred_region
      %s117 = ssub.s32 %s9, 1
      // Predicated region
      $region13: #{cnn_forward.4} parent=11 // pred_check
        %p118 = pneg %p56
      $region14: #{cnn_forward.4} parent=11 // pred_check_branch
        %120 = sbr.rel (%p118) target = $region16
      $region15: #{cnn_forward.4} parent=11 // pred_region
        _
      $region16: #{cnn_forward.4} parent=11 // pred_fallthru
        _
      // Predicated region
      $region17: #{cnn_forward.4} parent=11 // pred_check
        %p121 = pneg %p77
      $region18: #{cnn_forward.4} parent=11 // pred_check_branch
        %123 = sbr.rel (%p121) target = $region20
      $region19: #{cnn_forward.4} parent=11 // pred_region
        _
      $region20: #{cnn_forward.4} parent=11 // pred_fallthru
        _
    $region12: #{cnn_forward.4} parent=5 // pred_fallthru
      _
    %p124 = scmp.lt.s32.totalorder %s9, 2
    // Predicated region
    $region21: #{cnn_forward.4} parent=5 // pred_check
      %p125 = pneg %p124
    $region22: #{cnn_forward.4} parent=5 // pred_check_branch
      %127 = sbr.rel (%p125) target = $region24
    $region23: #{cnn_forward.4} parent=5 // pred_region
      // Predicated region
      $region25: #{cnn_forward.4} parent=23 // pred_check
        %p128 = pneg %p29
      $region26: #{cnn_forward.4} parent=23 // pred_check_branch
        %130 = sbr.rel (%p128) target = $region28
      $region27: #{cnn_forward.4} parent=23 // pred_region
        %p131 = scmp.lt.s32.totalorder %s9, 1
        %s132 = scalar_select %p131, %s9, 1
        %s133 = smul.addr %s132, 32
        %s134 = smul.addr %s133, 4
        %s135 = scalar_lea.vmem %s0, %s134
      $region28: #{cnn_forward.4} parent=23 // pred_fallthru
        _
    $region24: #{cnn_forward.4} parent=5 // pred_fallthru
      _
    %p136 = scmp.le.s32.totalorder 1, %s9
    %p137 = scmp.lt.s32.totalorder %s9, 3
    %p138 = pnand %p136, %p137
    %p139 = pneg %p138
    // Predicated region
    $region29: #{cnn_forward.4} parent=5 // pred_check
      _
    $region30: #{cnn_forward.4} parent=5 // pred_check_branch
      %141 = sbr.rel (%p138) target = $region32
    $region31: #{cnn_forward.4} parent=5 // pred_region
      %s142 = ssub.s32 %s9, 1
      %p143 = scmp.lt.s32.totalorder %s14, 1
      %s144 = scalar_select %p143, %s14, 1
      %s145 = smul.addr %s144, 32
      %s146 = smul.addr %s145, 4
      %s147 = scalar_lea.vmem %s0, %s146
      %p148 = pneg %p35
      %p149 = pneg %p32
      %p150 = pneg %p56
      %p151 = pneg %p53
      %p152 = pneg %p77
      %p153 = pneg %p74
      %p154 = pneg %p103
      %p155 = pneg %p100
      %p156 = scmp.lt.s32.totalorder %s14, 1
      %s157 = scalar_select %p156, %s14, 1
      %s158 = smul.addr %s157, 4
      %s159 = smul.addr %s158, 4
      %s160 = scalar_lea.vmem %s3, %s159
      %p161 = scmp.lt.s32.totalorder %s14, 1
      %s162 = scalar_select %p161, %s14, 1
      %s163 = smul.addr %s162, 32
      %s164 = smul.addr %s163, 4
      %s165 = scalar_lea.vmem %s0, %s164
      %p166 = scmp.lt.s32.totalorder %s14, 1
      %s167 = scalar_select %p166, %s14, 1
      %s168 = smul.addr %s167, 4
      %s169 = smul.addr %s168, 4
      %s170 = scalar_lea.vmem %s3, %s169
      %v171 = vld [vmem:[%s1] sm:$0xf]
      %v172 = vld [vmem:[%s1 + $0x4] sm:$0xf]
      %v173 = vld [vmem:[%s1 + $0x8] sm:$0xf]
      %v174 = vld [vmem:[%s1 + $0xc] sm:$0xf]
      %v175 = vld [vmem:[%s1 + $0x10] sm:$0xf]
      %v176 = vld [vmem:[%s1 + $0x14] sm:$0xf]
      %v177 = vld [vmem:[%s1 + $0x18] sm:$0xf]
      %v178 = vld [vmem:[%s1 + $0x1c] sm:$0xf]
      %v179 = vld [vmem:[%s1 + $0x20] sm:$0xf]
      %v180 = vld [vmem:[%s1 + $0x24] sm:$0xf]
      %v181 = vld [vmem:[%s1 + $0x28] sm:$0xf]
      %v182 = vld [vmem:[%s1 + $0x2c] sm:$0xf]
      %v183 = vld [vmem:[%s1 + $0x30] sm:$0xf]
      %v184 = vld [vmem:[%s1 + $0x34] sm:$0xf]
      %v185 = vld [vmem:[%s1 + $0x38] sm:$0xf]
      %v186 = vld [vmem:[%s1 + $0x3c] sm:$0xf]
      %v187 = vld [vmem:[%s1 + $0x40] sm:$0xf]
      %v188 = vld [vmem:[%s1 + $0x44] sm:$0xf]
      %v189 = vld [vmem:[%s1 + $0x48] sm:$0xf]
      %v190 = vld [vmem:[%s1 + $0x4c] sm:$0xf]
      %v191 = vld [vmem:[%s1 + $0x50] sm:$0xf]
      %v192 = vld [vmem:[%s1 + $0x54] sm:$0xf]
      %v193 = vld [vmem:[%s1 + $0x58] sm:$0xf]
      %v194 = vld [vmem:[%s1 + $0x5c] sm:$0xf]
      %v195 = vld [vmem:[%s1 + $0x60] sm:$0xf]
      %v196 = vld [vmem:[%s1 + $0x64] sm:$0xf]
      %v197 = vld [vmem:[%s1 + $0x68] sm:$0xf]
      %v198 = vld [vmem:[%s1 + $0x6c] sm:$0xf]
      %v199 = vld [vmem:[%s1 + $0x70] sm:$0xf]
      %v200 = vld [vmem:[%s1 + $0x74] sm:$0xf]
      %v201 = vld [vmem:[%s1 + $0x78] sm:$0xf]
      %v202 = vld [vmem:[%s1 + $0x7c] sm:$0xf]
      %v203 = vld [vmem:[%s165] sm:$0xff]
      %v204 = vld [vmem:[%s165 + $0x8] sm:$0xff]
      %v205 = vld [vmem:[%s165 + $0x10] sm:$0xff]
      %v206 = vld [vmem:[%s165 + $0x18] sm:$0x11]
      %v211 = vunpack.c.l.b16 %v203
      %v212 = vunpack.c.h.b16 %v203
      %v213 = vunpack.c.l.b16 %v204
      %v214 = vunpack.c.h.b16 %v204
      %v215 = vunpack.c.l.b16 %v205
      %v216 = vunpack.c.h.b16 %v205
      %v217 = vunpack.c.l.b16 %v206
      %v218 = vunpack.c.h.b16 %v206
      %v219 = vpack.c.b16 %v213, %v211
      %v220 = vpack.c.b16 %v214, %v212
      %v221 = vpack.c.b16 %v217, %v215
      %v222 = vpack.c.b16 %v218, %v216
      %v259 = vunpack.c.l.b16 %v171
      %v260 = vunpack.c.l.b16 %v172
      %v261 = vunpack.c.l.b16 %v173
      %v262 = vunpack.c.l.b16 %v174
      %v263 = vunpack.c.l.b16 %v175
      %v264 = vunpack.c.l.b16 %v176
      %v265 = vunpack.c.l.b16 %v177
      %v266 = vunpack.c.l.b16 %v178
      %v267 = vunpack.c.l.b16 %v179
      %v268 = vunpack.c.l.b16 %v180
      %v269 = vunpack.c.l.b16 %v181
      %v270 = vunpack.c.l.b16 %v182
      %v271 = vunpack.c.l.b16 %v183
      %v272 = vunpack.c.l.b16 %v184
      %v273 = vunpack.c.l.b16 %v185
      %v274 = vunpack.c.l.b16 %v186
      %v275 = vunpack.c.l.b16 %v187
      %v276 = vunpack.c.l.b16 %v188
      %v277 = vunpack.c.l.b16 %v189
      %v278 = vunpack.c.l.b16 %v190
      %v279 = vunpack.c.l.b16 %v191
      %v280 = vunpack.c.l.b16 %v192
      %v281 = vunpack.c.l.b16 %v193
      %v282 = vunpack.c.l.b16 %v194
      %v283 = vunpack.c.l.b16 %v195
      %v284 = vunpack.c.l.b16 %v196
      %v285 = vunpack.c.l.b16 %v197
      %v286 = vunpack.c.l.b16 %v198
      %v287 = vunpack.c.l.b16 %v199
      %v288 = vunpack.c.l.b16 %v200
      %v289 = vunpack.c.l.b16 %v201
      %v290 = vunpack.c.l.b16 %v202
      %v291 = vpack.c.b16 %v260, %v259
      %v292 = vpack.c.b16 %v262, %v261
      %v293 = vpack.c.b16 %v264, %v263
      %v294 = vpack.c.b16 %v266, %v265
      %v295 = vpack.c.b16 %v268, %v267
      %v296 = vpack.c.b16 %v270, %v269
      %v297 = vpack.c.b16 %v272, %v271
      %v298 = vpack.c.b16 %v274, %v273
      %v299 = vpack.c.b16 %v276, %v275
      %v300 = vpack.c.b16 %v278, %v277
      %v301 = vpack.c.b16 %v280, %v279
      %v302 = vpack.c.b16 %v282, %v281
      %v303 = vpack.c.b16 %v284, %v283
      %v304 = vpack.c.b16 %v286, %v285
      %v305 = vpack.c.b16 %v288, %v287
      %v306 = vpack.c.b16 %v290, %v289
      %323 = vmatpush.bf16.msra.mxu0 %v298
      %324 = vmatpush.bf16.msra.mxu0 %v297
      %325 = vmatpush.bf16.msra.mxu0 %v296
      %326 = vmatpush.bf16.msra.mxu0 %v295
      %327 = vmatpush.bf16.msra.mxu0 %v294
      %328 = vmatpush.bf16.msra.mxu0 %v293
      %329 = vmatpush.bf16.msra.mxu0 %v292
      %330 = vmatpush.bf16.msra.mxu0 %v291
      %331 = vmatmul.bf16.gmra.mxu0 %v219
      %v332 = vpop.f32.mrf.mxu0
      %v333 = vadd.f32 0.0, %v332
      %v334 = vpop.f32.mrf.mxu0
      %v335 = vadd.f32 0.0, %v334
      %336 = vmatmul.bf16.gmra.mxu0 %v221
      %v337 = vpop.f32.mrf.mxu0
      %v338 = vadd.f32 0.0, %v337
      %v339 = vpop.f32.mrf.mxu0
      %v340 = vadd.f32 0.0, %v339
      %341 = vdwg.mxu0
      %342 = vmatpush.bf16.msra.mxu0 %v306
      %343 = vmatpush.bf16.msra.mxu0 %v305
      %344 = vmatpush.bf16.msra.mxu0 %v304
      %345 = vmatpush.bf16.msra.mxu0 %v303
      %346 = vmatpush.bf16.msra.mxu0 %v302
      %347 = vmatpush.bf16.msra.mxu0 %v301
      %348 = vmatpush.bf16.msra.mxu0 %v300
      %349 = vmatpush.bf16.msra.mxu0 %v299
      %350 = vmatmul.bf16.gmra.mxu0 %v220
      %v351 = vpop.f32.mrf.mxu0
      %v352 = vadd.f32 %v333, %v351
      %v353 = vpop.f32.mrf.mxu0
      %v354 = vadd.f32 %v335, %v353
      %355 = vmatmul.bf16.gmra.mxu0 %v222
      %v356 = vpop.f32.mrf.mxu0
      %v357 = vadd.f32 %v338, %v356
      %v358 = vpop.f32.mrf.mxu0
      %v359 = vadd.f32 %v340, %v358
      %360 = vdwg.mxu0
      %s361 = scalar_lea.vmem %s165, 32
      %v362 = vld [vmem:[%s361] sm:$0xff]
      %v363 = vld [vmem:[%s361 + $0x8] sm:$0xff]
      %v364 = vld [vmem:[%s361 + $0x10] sm:$0xff]
      %v365 = vld [vmem:[%s361 + $0x18] sm:$0x11]
      %v370 = vunpack.c.l.b16 %v362
      %v371 = vunpack.c.h.b16 %v362
      %v372 = vunpack.c.l.b16 %v363
      %v373 = vunpack.c.h.b16 %v363
      %v374 = vunpack.c.l.b16 %v364
      %v375 = vunpack.c.h.b16 %v364
      %v376 = vunpack.c.l.b16 %v365
      %v377 = vunpack.c.h.b16 %v365
      %v378 = vpack.c.b16 %v372, %v370
      %v379 = vpack.c.b16 %v373, %v371
      %v380 = vpack.c.b16 %v376, %v374
      %v381 = vpack.c.b16 %v377, %v375
      %386 = vmatpush.bf16.msra.mxu0 %v298
      %387 = vmatpush.bf16.msra.mxu0 %v297
      %388 = vmatpush.bf16.msra.mxu0 %v296
      %389 = vmatpush.bf16.msra.mxu0 %v295
      %390 = vmatpush.bf16.msra.mxu0 %v294
      %391 = vmatpush.bf16.msra.mxu0 %v293
      %392 = vmatpush.bf16.msra.mxu0 %v292
      %393 = vmatpush.bf16.msra.mxu0 %v291
      %394 = vmatmul.bf16.gmra.mxu0 %v378
      %v395 = vpop.f32.mrf.mxu0
      %v396 = vadd.f32 0.0, %v395
      %v397 = vpop.f32.mrf.mxu0
      %v398 = vadd.f32 0.0, %v397
      %399 = vmatmul.bf16.gmra.mxu0 %v380
      %v400 = vpop.f32.mrf.mxu0
      %v401 = vadd.f32 0.0, %v400
      %v402 = vpop.f32.mrf.mxu0
      %v403 = vadd.f32 0.0, %v402
      %404 = vdwg.mxu0
      %405 = vmatpush.bf16.msra.mxu0 %v306
      %406 = vmatpush.bf16.msra.mxu0 %v305
      %407 = vmatpush.bf16.msra.mxu0 %v304
      %408 = vmatpush.bf16.msra.mxu0 %v303
      %409 = vmatpush.bf16.msra.mxu0 %v302
      %410 = vmatpush.bf16.msra.mxu0 %v301
      %411 = vmatpush.bf16.msra.mxu0 %v300
      %412 = vmatpush.bf16.msra.mxu0 %v299
      %413 = vmatmul.bf16.gmra.mxu0 %v379
      %v414 = vpop.f32.mrf.mxu0
      %v415 = vadd.f32 %v396, %v414
      %v416 = vpop.f32.mrf.mxu0
      %v417 = vadd.f32 %v398, %v416
      %418 = vmatmul.bf16.gmra.mxu0 %v381
      %v419 = vpop.f32.mrf.mxu0
      %v420 = vadd.f32 %v401, %v419
      %v421 = vpop.f32.mrf.mxu0
      %v422 = vadd.f32 %v403, %v421
      %423 = vdwg.mxu0
      %v424 = vmax.f32 %v352, %v415
      %v425 = vmax.f32 %v354, %v417
      %v426 = vmax.f32 %v357, %v420
      %v427 = vmax.f32 %v359, %v422
      %s428 = scalar_lea.vmem %s165, 64
      %v429 = vld [vmem:[%s428] sm:$0xff]
      %v430 = vld [vmem:[%s428 + $0x8] sm:$0xff]
      %v431 = vld [vmem:[%s428 + $0x10] sm:$0xff]
      %v432 = vld [vmem:[%s428 + $0x18] sm:$0x11]
      %v437 = vunpack.c.l.b16 %v429
      %v438 = vunpack.c.h.b16 %v429
      %v439 = vunpack.c.l.b16 %v430
      %v440 = vunpack.c.h.b16 %v430
      %v441 = vunpack.c.l.b16 %v431
      %v442 = vunpack.c.h.b16 %v431
      %v443 = vunpack.c.l.b16 %v432
      %v444 = vunpack.c.h.b16 %v432
      %v445 = vpack.c.b16 %v439, %v437
      %v446 = vpack.c.b16 %v440, %v438
      %v447 = vpack.c.b16 %v443, %v441
      %v448 = vpack.c.b16 %v444, %v442
      %453 = vmatpush.bf16.msra.mxu0 %v298
      %454 = vmatpush.bf16.msra.mxu0 %v297
      %455 = vmatpush.bf16.msra.mxu0 %v296
      %456 = vmatpush.bf16.msra.mxu0 %v295
      %457 = vmatpush.bf16.msra.mxu0 %v294
      %458 = vmatpush.bf16.msra.mxu0 %v293
      %459 = vmatpush.bf16.msra.mxu0 %v292
      %460 = vmatpush.bf16.msra.mxu0 %v291
      %461 = vmatmul.bf16.gmra.mxu0 %v445
      %v462 = vpop.f32.mrf.mxu0
      %v463 = vadd.f32 0.0, %v462
      %v464 = vpop.f32.mrf.mxu0
      %v465 = vadd.f32 0.0, %v464
      %466 = vmatmul.bf16.gmra.mxu0 %v447
      %v467 = vpop.f32.mrf.mxu0
      %v468 = vadd.f32 0.0, %v467
      %v469 = vpop.f32.mrf.mxu0
      %v470 = vadd.f32 0.0, %v469
      %471 = vdwg.mxu0
      %472 = vmatpush.bf16.msra.mxu0 %v306
      %473 = vmatpush.bf16.msra.mxu0 %v305
      %474 = vmatpush.bf16.msra.mxu0 %v304
      %475 = vmatpush.bf16.msra.mxu0 %v303
      %476 = vmatpush.bf16.msra.mxu0 %v302
      %477 = vmatpush.bf16.msra.mxu0 %v301
      %478 = vmatpush.bf16.msra.mxu0 %v300
      %479 = vmatpush.bf16.msra.mxu0 %v299
      %480 = vmatmul.bf16.gmra.mxu0 %v446
      %v481 = vpop.f32.mrf.mxu0
      %v482 = vadd.f32 %v463, %v481
      %v483 = vpop.f32.mrf.mxu0
      %v484 = vadd.f32 %v465, %v483
      %485 = vmatmul.bf16.gmra.mxu0 %v448
      %v486 = vpop.f32.mrf.mxu0
      %v487 = vadd.f32 %v468, %v486
      %v488 = vpop.f32.mrf.mxu0
      %v489 = vadd.f32 %v470, %v488
      %490 = vdwg.mxu0
      %v491 = vmax.f32 %v424, %v482
      %v492 = vmax.f32 %v425, %v484
      %v493 = vmax.f32 %v426, %v487
      %v494 = vmax.f32 %v427, %v489
      %s495 = scalar_lea.vmem %s165, 96
      %v496 = vld [vmem:[%s495] sm:$0xff]
      %v497 = vld [vmem:[%s495 + $0x8] sm:$0xff]
      %v498 = vld [vmem:[%s495 + $0x10] sm:$0xff]
      %v499 = vld [vmem:[%s495 + $0x18] sm:$0x11]
      %v504 = vunpack.c.l.b16 %v496
      %v505 = vunpack.c.h.b16 %v496
      %v506 = vunpack.c.l.b16 %v497
      %v507 = vunpack.c.h.b16 %v497
      %v508 = vunpack.c.l.b16 %v498
      %v509 = vunpack.c.h.b16 %v498
      %v510 = vunpack.c.l.b16 %v499
      %v511 = vunpack.c.h.b16 %v499
      %v512 = vpack.c.b16 %v506, %v504
      %v513 = vpack.c.b16 %v507, %v505
      %v514 = vpack.c.b16 %v510, %v508
      %v515 = vpack.c.b16 %v511, %v509
      %520 = vmatpush.bf16.msra.mxu0 %v298
      %521 = vmatpush.bf16.msra.mxu0 %v297
      %522 = vmatpush.bf16.msra.mxu0 %v296
      %523 = vmatpush.bf16.msra.mxu0 %v295
      %524 = vmatpush.bf16.msra.mxu0 %v294
      %525 = vmatpush.bf16.msra.mxu0 %v293
      %526 = vmatpush.bf16.msra.mxu0 %v292
      %527 = vmatpush.bf16.msra.mxu0 %v291
      %528 = vmatmul.bf16.gmra.mxu0 %v512
      %v529 = vpop.f32.mrf.mxu0
      %v530 = vadd.f32 0.0, %v529
      %v531 = vpop.f32.mrf.mxu0
      %v532 = vadd.f32 0.0, %v531
      %533 = vmatmul.bf16.gmra.mxu0 %v514
      %v534 = vpop.f32.mrf.mxu0
      %v535 = vadd.f32 0.0, %v534
      %v536 = vpop.f32.mrf.mxu0
      %v537 = vadd.f32 0.0, %v536
      %538 = vdwg.mxu0
      %539 = vmatpush.bf16.msra.mxu0 %v306
      %540 = vmatpush.bf16.msra.mxu0 %v305
      %541 = vmatpush.bf16.msra.mxu0 %v304
      %542 = vmatpush.bf16.msra.mxu0 %v303
      %543 = vmatpush.bf16.msra.mxu0 %v302
      %544 = vmatpush.bf16.msra.mxu0 %v301
      %545 = vmatpush.bf16.msra.mxu0 %v300
      %546 = vmatpush.bf16.msra.mxu0 %v299
      %547 = vmatmul.bf16.gmra.mxu0 %v513
      %v548 = vpop.f32.mrf.mxu0
      %v549 = vadd.f32 %v530, %v548
      %v550 = vpop.f32.mrf.mxu0
      %v551 = vadd.f32 %v532, %v550
      %552 = vmatmul.bf16.gmra.mxu0 %v515
      %v553 = vpop.f32.mrf.mxu0
      %v554 = vadd.f32 %v535, %v553
      %v555 = vpop.f32.mrf.mxu0
      %v556 = vadd.f32 %v537, %v555
      %557 = vdwg.mxu0
      %v558 = vmax.f32 %v491, %v549
      %v559 = vmax.f32 %v492, %v551
      %v560 = vmax.f32 %v493, %v554
      %v561 = vmax.f32 %v494, %v556
      %v562 = vld [vmem:[%s2] sm:$0x1]
      %v564 = vperm.slane %v562, 0
      %v566 = vadd.f32 %v558, %v564
      %v567 = vadd.f32 %v559, %v564
      %v568 = vadd.f32 %v560, %v564
      %v569 = vadd.f32 %v561, %v564
      %v570 = vmax.f32 %v566, 0.0
      %v571 = vmax.f32 %v567, 0.0
      %v572 = vmax.f32 %v568, 0.0
      %v573 = vmax.f32 %v569, 0.0
      %v574 = vpack.c.bf16 %v570, %v570
      %v575 = vpack.c.bf16 %v571, %v571
      %v576 = vpack.c.bf16 %v572, %v572
      %v577 = vpack.c.bf16 %v573, %v573
      %578 = vst [vmem:[%s170] sm:$0xf] %v574
      %579 = vst [vmem:[%s170 + $0x4] sm:$0xf] %v575
      %580 = vst [vmem:[%s170 + $0x8] sm:$0xf] %v576
      %vm581 = vcmask 1040384
      %vm582 = vsmask.f32 256
      %vm583 = vmand %vm581, %vm582
      %v584 = vld [vmem:[%s170 + $0xc] sm:$0x1]
      %v585 = vsel %vm583, %v577, %v584
      %586 = vst [vmem:[%s170 + $0xc] sm:$0x1] %v585
      %p587 = scmp.lt.s32.totalorder %s14, 1
      %s588 = scalar_select %p587, %s14, 1
      %s589 = smul.addr %s588, 4
      %s590 = smul.addr %s589, 4
      %s591 = scalar_lea.vmem %s3, %s590
      // Predicated region
      $region33: #{cnn_forward.4} parent=31 // pred_check
        %p592 = pneg %p100
      $region34: #{cnn_forward.4} parent=31 // pred_check_branch
        %594 = sbr.rel (%p592) target = $region36
      $region35: #{cnn_forward.4} parent=31 // pred_region
        _
      $region36: #{cnn_forward.4} parent=31 // pred_fallthru
        _
    $region32: #{cnn_forward.4} parent=5 // pred_fallthru
      _
    %p595 = scmp.le.s32.totalorder 2, %s9
    // Predicated region
    $region37: #{cnn_forward.4} parent=5 // pred_check
      %p596 = pneg %p595
    $region38: #{cnn_forward.4} parent=5 // pred_check_branch
      %598 = sbr.rel (%p596) target = $region40
    $region39: #{cnn_forward.4} parent=5 // pred_region
      %s599 = ssub.s32 %s9, 2
      // Predicated region
      $region41: #{cnn_forward.4} parent=39 // pred_check
        %p600 = pneg %p106
      $region42: #{cnn_forward.4} parent=39 // pred_check_branch
        %602 = sbr.rel (%p600) target = $region44
      $region43: #{cnn_forward.4} parent=39 // pred_region
        %p603 = scmp.lt.s32.totalorder %s15, 1
        %s604 = scalar_select %p603, %s15, 1
        %s605 = smul.addr %s604, 4
        %s606 = smul.addr %s605, 4
        %s607 = scalar_lea.vmem %s3, %s606
      $region44: #{cnn_forward.4} parent=39 // pred_fallthru
        _
    $region40: #{cnn_forward.4} parent=5 // pred_fallthru
      _
  $region6: #{cnn_forward.4} parent=0 // loop_footer
    %s13 = sadd.s32 1, %s9
  $region7: #{cnn_forward.4} parent=0 // loop_footer_branch
    %8 = sbr.rel target = $region3
  $region8: #{cnn_forward.4} parent=0 // loop_exit
    _

</llo_original>
